<compile_context>
chip_gen: v7x
topology: tpu7x:2x2x1
jax: 0.10.0
libtpu: 0.0.40
codegen_flags: <defaults>
</compile_context>

<pallas_src>
import functools

import jax
import jax.numpy as jnp
from jax import lax
from jax.experimental import pallas as pl
from jax.experimental.pallas import tpu as pltpu


def _round_up(x, m):
    return ((x + m - 1) // m) * m


def _char_decoder_kernel(ids_ref,            # SMEM (B, Lp) int32 (scalar prefetch)
                         table_ref,          # VMEM (Vp, Gp) bf16: emb@Wih^T + bias
                         whh_ref,            # VMEM (H, Gp)  bf16: W_hh^T (packed gates)
                         wout_ref,           # VMEM (H, Vp)  bf16: W_out^T (pad lanes 0)
                         bout_ref,           # VMEM (Bp, Vp) f32 : b_out broadcast
                         h0_ref, c0_ref,     # VMEM (Bp, H)  f32 : initial state
                         scores_ref,         # VMEM (Lc, Bp, Vp) f32 out (blocked over L)
                         hn_ref, cn_ref,     # VMEM (Bp, H) f32 out (resident carry)
                         *, h, b, bp, vp, lc, seq_len, unroll):
    chunk = pl.program_id(0)

    @pl.when(chunk == 0)
    def _():
        hn_ref[...] = h0_ref[...]
        cn_ref[...] = c0_ref[...]

    # Hoisted loads / broadcasts (do not recreate inside the loop).
    table = table_ref[...]
    whh = whh_ref[...]
    wout = wout_ref[...]
    bout = bout_ref[...]
    row_iota = lax.broadcasted_iota(jnp.int32, (bp, vp), 0)
    col_iota = lax.broadcasted_iota(jnp.int32, (bp, vp), 1)

    def step(t, carry):
        h_prev, c_prev = carry
        tg = chunk * lc + t                       # global time index

        # --- embedding gather as a one-hot MXU matmul (MXU is otherwise idle).
        # Pad batch rows stay all-zero -> their h/c stay exactly 0.
        # TODO(synk): O(B) select chain; for large B switch to a VMEM id column
        #             + lane-broadcast compare instead.
        onehot = jnp.zeros((bp, vp), jnp.float32)
        for bi in range(b):
            sel = (row_iota == bi) & (col_iota == ids_ref[bi, tg])
            onehot = jnp.where(sel, 1.0, onehot)
        gx = jnp.dot(onehot.astype(jnp.bfloat16), table,
                     preferred_element_type=jnp.float32)            # (Bp, Gp)

        # --- recurrent projection: packed gates -> single narrow MXU pass.
        gates = gx + jnp.dot(h_prev.astype(jnp.bfloat16), whh,
                             preferred_element_type=jnp.float32)    # (Bp, Gp)

        # PyTorch LSTM gate order: i, f, g, o (static lane slices, f32 math).
        i_g = jax.nn.sigmoid(gates[:, 0 * h:1 * h])
        f_g = jax.nn.sigmoid(gates[:, 1 * h:2 * h])
        g_g = jnp.tanh(gates[:, 2 * h:3 * h])
        o_g = jax.nn.sigmoid(gates[:, 3 * h:4 * h])
        c_new = f_g * c_prev + i_g * g_g
        h_new = o_g * jnp.tanh(c_new)

        # Freeze the state on padded time steps (when L % Lc != 0).
        valid = tg < seq_len
        h_new = jnp.where(valid, h_new, h_prev)
        c_new = jnp.where(valid, c_new, c_prev)

        # --- fused output projection: lane-dense (Bp, Vp) store.
        scores_ref[t] = jnp.dot(h_new.astype(jnp.bfloat16), wout,
                                preferred_element_type=jnp.float32) + bout
        return h_new, c_new

    h_fin, c_fin = lax.fori_loop(0, lc, step,
                                 (hn_ref[...], cn_ref[...]), unroll=unroll)
    hn_ref[...] = h_fin
    cn_ref[...] = c_fin


def char_decoder_forward(input_ids, params, dec_hidden=None, *, max_chunk=128):
    """input_ids: (L, B) int32. Returns (scores (L,B,V), (h,c) each (1,B,H))."""
    emb = params["emb"].astype(jnp.float32)      # (V, E)
    w_ih = params["w_ih"].astype(jnp.float32)    # (4H, E)  PyTorch layout
    w_hh = params["w_hh"].astype(jnp.float32)    # (4H, H)
    b_ih = params["b_ih"].astype(jnp.float32)    # (4H,)
    b_hh = params["b_hh"].astype(jnp.float32)    # (4H,)
    w_out = params["w_out"].astype(jnp.float32)  # (V, H)
    b_out = params["b_out"].astype(jnp.float32)  # (V,)

    L, B = input_ids.shape
    V, E = emb.shape
    H = w_hh.shape[1]

    Bp = _round_up(B, 8)            # full sublane granule
    Vp = _round_up(V, 128)          # lane-dense one-hot / score width
    Gp = _round_up(4 * H, 128)      # packed gate lanes (H=32 -> exactly 128)

    Lc = min(L, max_chunk)          # time-chunk size (v7x VMEM-safe)
    num_chunks = -(-L // Lc)
    Lp = num_chunks * Lc

    # Gate table: emb @ W_ih^T + (b_ih + b_hh); pad vocab rows / gate lanes
    # with zeros, cast to bf16 (f32 accumulation happens in the kernel).
    gate_tbl = emb @ w_ih.T + (b_ih + b_hh)[None, :]                  # (V, 4H)
    gate_tbl = jnp.pad(gate_tbl, ((0, Vp - V), (0, Gp - 4 * H)))
    gate_tbl = gate_tbl.astype(jnp.bfloat16)                          # (Vp, Gp)

    whh_t = jnp.pad(w_hh.T, ((0, 0), (0, Gp - 4 * H))).astype(jnp.bfloat16)   # (H, Gp)
    wout_t = jnp.pad(w_out.T, ((0, 0), (0, Vp - V))).astype(jnp.bfloat16)     # (H, Vp)
    bout_p = jnp.broadcast_to(jnp.pad(b_out, (0, Vp - V))[None, :],
                              (Bp, Vp)).astype(jnp.float32)                   # (Bp, Vp)

    if dec_hidden is None:
        h0 = jnp.zeros((Bp, H), jnp.float32)
        c0 = jnp.zeros((Bp, H), jnp.float32)
    else:
        h0 = jnp.pad(dec_hidden[0].astype(jnp.float32).reshape(B, H),
                     ((0, Bp - B), (0, 0)))
        c0 = jnp.pad(dec_hidden[1].astype(jnp.float32).reshape(B, H),
                     ((0, Bp - B), (0, 0)))

    # ids laid out (B, Lp): long axis last so SMEM padding stays small.
    ids_bt = jnp.pad(input_ids.astype(jnp.int32).T, ((0, 0), (0, Lp - L)))   # (B, Lp)

    kernel = functools.partial(
        _char_decoder_kernel,
        h=H, b=B, bp=Bp, vp=Vp, lc=Lc, seq_len=L,
        unroll=(Lc if Lc <= 16 else 8))

    # TODO(synk): on v7x with B >= 16, add a leading "parallel" batch axis (or
    # core_map) so the two TensorCores each run half the batch.
    scores_p, h_n, c_n = pl.pallas_call(
        kernel,
        out_shape=(
            jax.ShapeDtypeStruct((Lp, Bp, Vp), jnp.float32),   # fused scores
            jax.ShapeDtypeStruct((Bp, H), jnp.float32),        # final h
            jax.ShapeDtypeStruct((Bp, H), jnp.float32),        # final c
        ),
        grid_spec=pltpu.PrefetchScalarGridSpec(
            num_scalar_prefetch=1,                 # input_ids -> SMEM
            grid=(num_chunks,),
            in_specs=[
                pl.BlockSpec((Vp, Gp), lambda i, ids: (0, 0)),   # gate table
                pl.BlockSpec((H, Gp), lambda i, ids: (0, 0)),    # W_hh^T
                pl.BlockSpec((H, Vp), lambda i, ids: (0, 0)),    # W_out^T
                pl.BlockSpec((Bp, Vp), lambda i, ids: (0, 0)),   # b_out
                pl.BlockSpec((Bp, H), lambda i, ids: (0, 0)),    # h0
                pl.BlockSpec((Bp, H), lambda i, ids: (0, 0)),    # c0
            ],
            out_specs=[
                pl.BlockSpec((Lc, Bp, Vp), lambda i, ids: (i, 0, 0)),
                pl.BlockSpec((Bp, H), lambda i, ids: (0, 0)),    # resident carry
                pl.BlockSpec((Bp, H), lambda i, ids: (0, 0)),    # resident carry
            ],
        ),
        compiler_params=pltpu.CompilerParams(
            dimension_semantics=("arbitrary",)),   # serial time recurrence
    )(ids_bt, gate_tbl, whh_t, wout_t, bout_p, h0, c0)

    scores = scores_p[:L, :B, :V]
    h_n = h_n[:B].reshape(1, B, H)
    c_n = c_n[:B].reshape(1, B, H)
    return scores, (h_n, c_n)


def char_decoder_reference(input_ids, params, dec_hidden=None):
    """Pure-JAX reference (PyTorch nn.LSTM semantics) for validation."""
    emb = params["emb"].astype(jnp.float32)
    w_ih = params["w_ih"].astype(jnp.float32)
    w_hh = params["w_hh"].astype(jnp.float32)
    b = (params["b_ih"] + params["b_hh"]).astype(jnp.float32)
    w_out = params["w_out"].astype(jnp.float32)
    b_out = params["b_out"].astype(jnp.float32)
    L, B = input_ids.shape
    H = w_hh.shape[1]

    x = jnp.take(emb, input_ids, axis=0)
    if dec_hidden is None:
        h = jnp.zeros((B, H), jnp.float32)
        c = jnp.zeros((B, H), jnp.float32)
    else:
        h = dec_hidden[0][0].astype(jnp.float32)
        c = dec_hidden[1][0].astype(jnp.float32)

    def step(carry, x_t):
        h, c = carry
        gates = x_t @ w_ih.T + h @ w_hh.T + b
        i = jax.nn.sigmoid(gates[:, 0 * H:1 * H])
        f = jax.nn.sigmoid(gates[:, 1 * H:2 * H])
        g = jnp.tanh(gates[:, 2 * H:3 * H])
        o = jax.nn.sigmoid(gates[:, 3 * H:4 * H])
        c = f * c + i * g
        h = o * jnp.tanh(c)
        return (h, c), h

    (h, c), hs = lax.scan(step, (h, c), x)
    scores = jnp.einsum("lbh,vh->lbv", hs, w_out) + b_out
    return scores, (h[None], c[None])


def init_params(key, vocab_size, char_embedding_size, hidden_size, pad_idx=0):
    """Deterministic synthetic parameters matching CharDecoder.__init__ shapes."""
    k = jax.random.split(key, 7)
    V, E, H = vocab_size, char_embedding_size, hidden_size

    emb = jax.random.normal(k[0], (V, E), jnp.float32)
    emb = emb.at[pad_idx].set(0.0)

    s = 1.0 / jnp.sqrt(jnp.float32(H))
    w_ih = jax.random.uniform(k[1], (4 * H, E), jnp.float32, -s, s)
    w_hh = jax.random.uniform(k[2], (4 * H, H), jnp.float32, -s, s)
    b_ih = jax.random.uniform(k[3], (4 * H,), jnp.float32, -s, s)
    b_hh = jax.random.uniform(k[4], (4 * H,), jnp.float32, -s, s)

    xav = jnp.sqrt(6.0 / (H + V))
    w_out = jax.random.uniform(k[5], (V, H), jnp.float32, -xav, xav)
    b_out = jax.random.uniform(k[6], (V,), jnp.float32, -s, s)

    return dict(emb=emb, w_ih=w_ih, w_hh=w_hh, b_ih=b_ih, b_hh=b_hh,
                w_out=w_out, b_out=b_out)


if __name__ == "__main__":
    LENGTH, BATCH = 8, 4
    HIDDEN = 32
    CHAR_EMB = 50
    VOCAB = 30          # len(target_vocab.char2id)
    PAD_IDX = 0         # target_vocab.char2id['<pad>']

    key = jax.random.PRNGKey(0)
    kp, ki, kh, kc = jax.random.split(key, 4)

    params = init_params(kp, VOCAB, CHAR_EMB, HIDDEN, pad_idx=PAD_IDX)

    input_ids = jax.random.randint(ki, (LENGTH, BATCH), 0, VOCAB, jnp.int32)
    dec_hidden = (
        jax.random.normal(kh, (1, BATCH, HIDDEN), jnp.float32),
        jax.random.normal(kc, (1, BATCH, HIDDEN), jnp.float32),
    )

    scores, (h_n, c_n) = char_decoder_forward(input_ids, params, dec_hidden)
    jax.block_until_ready((scores, h_n, c_n))

    assert scores.shape == (LENGTH, BATCH, VOCAB)
    assert h_n.shape == (1, BATCH, HIDDEN) and c_n.shape == (1, BATCH, HIDDEN)

    # Validate against a pure-JAX f32 reference (tolerance covers bf16 weights).
    ref_scores, (ref_h, ref_c) = char_decoder_reference(input_ids, params,
                                                        dec_hidden)
    assert jnp.allclose(scores, ref_scores, atol=3e-2, rtol=3e-2)
    assert jnp.allclose(h_n, ref_h, atol=3e-2, rtol=3e-2)
    assert jnp.allclose(c_n, ref_c, atol=3e-2, rtol=3e-2)

    print("KERNEL_OK")
</pallas_src>

<mosaic_0001>
module attributes {stable_mosaic.version = 11 : i64} {
  func.func @_char_decoder_kernel(%arg0: i32, %arg1: memref<4x8xi32, #tpu.memory_space<smem>>, %arg2: memref<128x128xbf16, #tpu.memory_space<vmem>>, %arg3: memref<32x128xbf16, #tpu.memory_space<vmem>>, %arg4: memref<32x128xbf16, #tpu.memory_space<vmem>>, %arg5: memref<8x128xf32, #tpu.memory_space<vmem>>, %arg6: memref<8x32xf32, #tpu.memory_space<vmem>>, %arg7: memref<8x32xf32, #tpu.memory_space<vmem>>, %arg8: memref<8x8x128xf32, #tpu.memory_space<vmem>>, %arg9: memref<8x32xf32, #tpu.memory_space<vmem>>, %arg10: memref<8x32xf32, #tpu.memory_space<vmem>>) attributes {dimension_semantics = [#tpu.dimension_semantics<arbitrary>], iteration_bounds = array<i64: 1>, scalar_prefetch = 1 : i64, scratch_operands = 0 : i64, tpu.core_type = #tpu.core_type<tc>, window_params = [{pipeline_mode = #tpu.pipeline_mode<synchronous>, transform_indices = @transform_0, window_bounds = array<i64: 128, 128>}, {pipeline_mode = #tpu.pipeline_mode<synchronous>, transform_indices = @transform_1, window_bounds = array<i64: 32, 128>}, {pipeline_mode = #tpu.pipeline_mode<synchronous>, transform_indices = @transform_2, window_bounds = array<i64: 32, 128>}, {pipeline_mode = #tpu.pipeline_mode<synchronous>, transform_indices = @transform_3, window_bounds = array<i64: 8, 128>}, {pipeline_mode = #tpu.pipeline_mode<synchronous>, transform_indices = @transform_4, window_bounds = array<i64: 8, 32>}, {pipeline_mode = #tpu.pipeline_mode<synchronous>, transform_indices = @transform_5, window_bounds = array<i64: 8, 32>}, {transform_indices = @transform_6, window_bounds = array<i64: 8, 8, 128>}, {pipeline_mode = #tpu.pipeline_mode<synchronous>, transform_indices = @transform_7, window_bounds = array<i64: 8, 32>}, {pipeline_mode = #tpu.pipeline_mode<synchronous>, transform_indices = @transform_8, window_bounds = array<i64: 8, 32>}]} {
    %c0_i32 = arith.constant 0 : i32
    %0 = arith.cmpi eq, %arg0, %c0_i32 : i32
    %1 = arith.extui %0 : i1 to i32
    %c0_i32_0 = arith.constant 0 : i32
    %2 = arith.cmpi ne, %1, %c0_i32_0 : i32
    scf.if %2 {
      %c0_197 = arith.constant 0 : index
      %c0_198 = arith.constant 0 : index
      %645 = vector.load %arg6[%c0_197, %c0_198] : memref<8x32xf32, #tpu.memory_space<vmem>>, vector<8x32xf32>
      %c0_199 = arith.constant 0 : index
      %c0_200 = arith.constant 0 : index
      %646 = vector.load %arg9[%c0_199, %c0_200] : memref<8x32xf32, #tpu.memory_space<vmem>>, vector<8x32xf32>
      tpu.vector_store %arg9[%c0_199, %c0_200], %645 {strides = array<i32>} : memref<8x32xf32, #tpu.memory_space<vmem>>, vector<8x32xf32>,
      %c0_201 = arith.constant 0 : index
      %c0_202 = arith.constant 0 : index
      %647 = vector.load %arg7[%c0_201, %c0_202] : memref<8x32xf32, #tpu.memory_space<vmem>>, vector<8x32xf32>
      %c0_203 = arith.constant 0 : index
      %c0_204 = arith.constant 0 : index
      %648 = vector.load %arg10[%c0_203, %c0_204] : memref<8x32xf32, #tpu.memory_space<vmem>>, vector<8x32xf32>
      tpu.vector_store %arg10[%c0_203, %c0_204], %647 {strides = array<i32>} : memref<8x32xf32, #tpu.memory_space<vmem>>, vector<8x32xf32>,
    } else {
    }
    %c0 = arith.constant 0 : index
    %c0_1 = arith.constant 0 : index
    %3 = vector.load %arg2[%c0, %c0_1] : memref<128x128xbf16, #tpu.memory_space<vmem>>, vector<128x128xbf16>
    %c0_2 = arith.constant 0 : index
    %c0_3 = arith.constant 0 : index
    %4 = vector.load %arg3[%c0_2, %c0_3] : memref<32x128xbf16, #tpu.memory_space<vmem>>, vector<32x128xbf16>
    %c0_4 = arith.constant 0 : index
    %c0_5 = arith.constant 0 : index
    %5 = vector.load %arg4[%c0_4, %c0_5] : memref<32x128xbf16, #tpu.memory_space<vmem>>, vector<32x128xbf16>
    %c0_6 = arith.constant 0 : index
    %c0_7 = arith.constant 0 : index
    %6 = vector.load %arg5[%c0_6, %c0_7] : memref<8x128xf32, #tpu.memory_space<vmem>>, vector<8x128xf32>
    %7 = tpu.iota {dimensions = array<i32: 0>} : vector<8x128xi32>
    %8 = tpu.iota {dimensions = array<i32: 1>} : vector<8x128xi32>
    %c0_8 = arith.constant 0 : index
    %c0_9 = arith.constant 0 : index
    %9 = vector.load %arg9[%c0_8, %c0_9] : memref<8x32xf32, #tpu.memory_space<vmem>>, vector<8x32xf32>
    %c0_10 = arith.constant 0 : index
    %c0_11 = arith.constant 0 : index
    %10 = vector.load %arg10[%c0_10, %c0_11] : memref<8x32xf32, #tpu.memory_space<vmem>>, vector<8x32xf32>
    %c0_i32_12 = arith.constant 0 : i32
    %c8_i32 = arith.constant 8 : i32
    %11 = arith.muli %arg0, %c8_i32 : i32
    %12 = arith.addi %11, %c0_i32_12 : i32
    %cst = arith.constant 0.000000e+00 : f32
    %13 = vector.broadcast %cst : f32 to vector<8x128xf32>
    %c0_i32_13 = arith.constant 0 : i32
    %14 = vector.broadcast %c0_i32_13 : i32 to vector<8x128xi32>
    %15 = arith.cmpi eq, %7, %14 : vector<8x128xi32>
    %c0_14 = arith.constant 0 : index
    %16 = arith.index_cast %12 : i32 to index
    %17 = memref.load %arg1[%c0_14, %16] : memref<4x8xi32, #tpu.memory_space<smem>>
    %18 = vector.broadcast %17 : i32 to vector<8x128xi32>
    %19 = arith.cmpi eq, %8, %18 : vector<8x128xi32>
    %20 = arith.andi %15, %19 : vector<8x128xi1>
    %cst_15 = arith.constant 1.000000e+00 : f32
    %21 = vector.broadcast %cst_15 : f32 to vector<8x128xf32>
    %22 = arith.select %20, %21, %13 : vector<8x128xi1>, vector<8x128xf32>
    %c1_i32 = arith.constant 1 : i32
    %23 = vector.broadcast %c1_i32 : i32 to vector<8x128xi32>
    %24 = arith.cmpi eq, %7, %23 : vector<8x128xi32>
    %c1 = arith.constant 1 : index
    %25 = arith.index_cast %12 : i32 to index
    %26 = memref.load %arg1[%c1, %25] : memref<4x8xi32, #tpu.memory_space<smem>>
    %27 = vector.broadcast %26 : i32 to vector<8x128xi32>
    %28 = arith.cmpi eq, %8, %27 : vector<8x128xi32>
    %29 = arith.andi %24, %28 : vector<8x128xi1>
    %cst_16 = arith.constant 1.000000e+00 : f32
    %30 = vector.broadcast %cst_16 : f32 to vector<8x128xf32>
    %31 = arith.select %29, %30, %22 : vector<8x128xi1>, vector<8x128xf32>
    %c2_i32 = arith.constant 2 : i32
    %32 = vector.broadcast %c2_i32 : i32 to vector<8x128xi32>
    %33 = arith.cmpi eq, %7, %32 : vector<8x128xi32>
    %c2 = arith.constant 2 : index
    %34 = arith.index_cast %12 : i32 to index
    %35 = memref.load %arg1[%c2, %34] : memref<4x8xi32, #tpu.memory_space<smem>>
    %36 = vector.broadcast %35 : i32 to vector<8x128xi32>
    %37 = arith.cmpi eq, %8, %36 : vector<8x128xi32>
    %38 = arith.andi %33, %37 : vector<8x128xi1>
    %cst_17 = arith.constant 1.000000e+00 : f32
    %39 = vector.broadcast %cst_17 : f32 to vector<8x128xf32>
    %40 = arith.select %38, %39, %31 : vector<8x128xi1>, vector<8x128xf32>
    %c3_i32 = arith.constant 3 : i32
    %41 = vector.broadcast %c3_i32 : i32 to vector<8x128xi32>
    %42 = arith.cmpi eq, %7, %41 : vector<8x128xi32>
    %c3 = arith.constant 3 : index
    %43 = arith.index_cast %12 : i32 to index
    %44 = memref.load %arg1[%c3, %43] : memref<4x8xi32, #tpu.memory_space<smem>>
    %45 = vector.broadcast %44 : i32 to vector<8x128xi32>
    %46 = arith.cmpi eq, %8, %45 : vector<8x128xi32>
    %47 = arith.andi %42, %46 : vector<8x128xi1>
    %cst_18 = arith.constant 1.000000e+00 : f32
    %48 = vector.broadcast %cst_18 : f32 to vector<8x128xf32>
    %49 = arith.select %47, %48, %40 : vector<8x128xi1>, vector<8x128xf32>
    %50 = arith.truncf %49 : vector<8x128xf32> to vector<8x128xbf16>
    %cst_19 = arith.constant dense<0.000000e+00> : vector<8x128xf32>
    %51 = tpu.matmul %50, %3, %cst_19 {dimension_numbers = #tpu.dot_dimension_numbers<[1], [0], [0], [1], [0, 0, 1, 1], [], []>} : vector<8x128xbf16>, vector<128x128xbf16>, vector<8x128xf32> -> vector<8x128xf32>
    %52 = arith.truncf %9 : vector<8x32xf32> to vector<8x32xbf16>
    %cst_20 = arith.constant dense<0.000000e+00> : vector<8x128xf32>
    %53 = tpu.matmul %52, %4, %cst_20 {dimension_numbers = #tpu.dot_dimension_numbers<[1], [0], [0], [1], [0, 0, 1, 1], [], []>} : vector<8x32xbf16>, vector<32x128xbf16>, vector<8x128xf32> -> vector<8x128xf32>
    %54 = arith.addf %51, %53 : vector<8x128xf32>
    %55 = vector.extract_strided_slice %54 {offsets = [0, 0], sizes = [8, 32], strides = [1, 1]} : vector<8x128xf32> to vector<8x32xf32>
    %56 = arith.negf %55 : vector<8x32xf32>
    %57 = math.exp %56 : vector<8x32xf32>
    %cst_21 = arith.constant 1.000000e+00 : f32
    %58 = vector.broadcast %cst_21 : f32 to vector<8x32xf32>
    %59 = arith.addf %58, %57 : vector<8x32xf32>
    %60 = arith.divf %58, %59 : vector<8x32xf32>
    %61 = vector.extract_strided_slice %54 {offsets = [0, 32], sizes = [8, 32], strides = [1, 1]} : vector<8x128xf32> to vector<8x32xf32>
    %62 = arith.negf %61 : vector<8x32xf32>
    %63 = math.exp %62 : vector<8x32xf32>
    %cst_22 = arith.constant 1.000000e+00 : f32
    %64 = vector.broadcast %cst_22 : f32 to vector<8x32xf32>
    %65 = arith.addf %64, %63 : vector<8x32xf32>
    %66 = arith.divf %64, %65 : vector<8x32xf32>
    %67 = vector.extract_strided_slice %54 {offsets = [0, 64], sizes = [8, 32], strides = [1, 1]} : vector<8x128xf32> to vector<8x32xf32>
    %68 = math.tanh %67 : vector<8x32xf32>
    %69 = vector.extract_strided_slice %54 {offsets = [0, 96], sizes = [8, 32], strides = [1, 1]} : vector<8x128xf32> to vector<8x32xf32>
    %70 = arith.negf %69 : vector<8x32xf32>
    %71 = math.exp %70 : vector<8x32xf32>
    %cst_23 = arith.constant 1.000000e+00 : f32
    %72 = vector.broadcast %cst_23 : f32 to vector<8x32xf32>
    %73 = arith.addf %72, %71 : vector<8x32xf32>
    %74 = arith.divf %72, %73 : vector<8x32xf32>
    %75 = arith.mulf %66, %10 : vector<8x32xf32>
    %76 = arith.mulf %60, %68 : vector<8x32xf32>
    %77 = arith.addf %75, %76 : vector<8x32xf32>
    %78 = math.tanh %77 : vector<8x32xf32>
    %79 = arith.mulf %74, %78 : vector<8x32xf32>
    %c8_i32_24 = arith.constant 8 : i32
    %80 = arith.cmpi slt, %12, %c8_i32_24 : i32
    %81 = arith.select %80, %79, %9 : vector<8x32xf32>
    %82 = arith.select %80, %77, %10 : vector<8x32xf32>
    %83 = arith.truncf %81 : vector<8x32xf32> to vector<8x32xbf16>
    %cst_25 = arith.constant dense<0.000000e+00> : vector<8x128xf32>
    %84 = tpu.matmul %83, %5, %cst_25 {dimension_numbers = #tpu.dot_dimension_numbers<[1], [0], [0], [1], [0, 0, 1, 1], [], []>} : vector<8x32xbf16>, vector<32x128xbf16>, vector<8x128xf32> -> vector<8x128xf32>
    %85 = arith.addf %84, %6 : vector<8x128xf32>
    %86 = arith.index_cast %c0_i32_12 : i32 to index
    %c0_26 = arith.constant 0 : index
    %c0_27 = arith.constant 0 : index
    %87 = vector.load %arg8[%86, %c0_26, %c0_27] : memref<8x8x128xf32, #tpu.memory_space<vmem>>, vector<1x8x128xf32>
    %88 = vector.shape_cast %87 : vector<1x8x128xf32> to vector<8x128xf32>
    %89 = vector.shape_cast %85 : vector<8x128xf32> to vector<1x8x128xf32>
    tpu.vector_store %arg8[%86, %c0_26, %c0_27], %89 {strides = array<i32>} : memref<8x8x128xf32, #tpu.memory_space<vmem>>, vector<1x8x128xf32>,
    %c1_i32_28 = arith.constant 1 : i32
    %c8_i32_29 = arith.constant 8 : i32
    %90 = arith.muli %arg0, %c8_i32_29 : i32
    %91 = arith.addi %90, %c1_i32_28 : i32
    %cst_30 = arith.constant 0.000000e+00 : f32
    %92 = vector.broadcast %cst_30 : f32 to vector<8x128xf32>
    %c0_i32_31 = arith.constant 0 : i32
    %93 = vector.broadcast %c0_i32_31 : i32 to vector<8x128xi32>
    %94 = arith.cmpi eq, %7, %93 : vector<8x128xi32>
    %c0_32 = arith.constant 0 : index
    %95 = arith.index_cast %91 : i32 to index
    %96 = memref.load %arg1[%c0_32, %95] : memref<4x8xi32, #tpu.memory_space<smem>>
    %97 = vector.broadcast %96 : i32 to vector<8x128xi32>
    %98 = arith.cmpi eq, %8, %97 : vector<8x128xi32>
    %99 = arith.andi %94, %98 : vector<8x128xi1>
    %cst_33 = arith.constant 1.000000e+00 : f32
    %100 = vector.broadcast %cst_33 : f32 to vector<8x128xf32>
    %101 = arith.select %99, %100, %92 : vector<8x128xi1>, vector<8x128xf32>
    %c1_i32_34 = arith.constant 1 : i32
    %102 = vector.broadcast %c1_i32_34 : i32 to vector<8x128xi32>
    %103 = arith.cmpi eq, %7, %102 : vector<8x128xi32>
    %c1_35 = arith.constant 1 : index
    %104 = arith.index_cast %91 : i32 to index
    %105 = memref.load %arg1[%c1_35, %104] : memref<4x8xi32, #tpu.memory_space<smem>>
    %106 = vector.broadcast %105 : i32 to vector<8x128xi32>
    %107 = arith.cmpi eq, %8, %106 : vector<8x128xi32>
    %108 = arith.andi %103, %107 : vector<8x128xi1>
    %cst_36 = arith.constant 1.000000e+00 : f32
    %109 = vector.broadcast %cst_36 : f32 to vector<8x128xf32>
    %110 = arith.select %108, %109, %101 : vector<8x128xi1>, vector<8x128xf32>
    %c2_i32_37 = arith.constant 2 : i32
    %111 = vector.broadcast %c2_i32_37 : i32 to vector<8x128xi32>
    %112 = arith.cmpi eq, %7, %111 : vector<8x128xi32>
    %c2_38 = arith.constant 2 : index
    %113 = arith.index_cast %91 : i32 to index
    %114 = memref.load %arg1[%c2_38, %113] : memref<4x8xi32, #tpu.memory_space<smem>>
    %115 = vector.broadcast %114 : i32 to vector<8x128xi32>
    %116 = arith.cmpi eq, %8, %115 : vector<8x128xi32>
    %117 = arith.andi %112, %116 : vector<8x128xi1>
    %cst_39 = arith.constant 1.000000e+00 : f32
    %118 = vector.broadcast %cst_39 : f32 to vector<8x128xf32>
    %119 = arith.select %117, %118, %110 : vector<8x128xi1>, vector<8x128xf32>
    %c3_i32_40 = arith.constant 3 : i32
    %120 = vector.broadcast %c3_i32_40 : i32 to vector<8x128xi32>
    %121 = arith.cmpi eq, %7, %120 : vector<8x128xi32>
    %c3_41 = arith.constant 3 : index
    %122 = arith.index_cast %91 : i32 to index
    %123 = memref.load %arg1[%c3_41, %122] : memref<4x8xi32, #tpu.memory_space<smem>>
    %124 = vector.broadcast %123 : i32 to vector<8x128xi32>
    %125 = arith.cmpi eq, %8, %124 : vector<8x128xi32>
    %126 = arith.andi %121, %125 : vector<8x128xi1>
    %cst_42 = arith.constant 1.000000e+00 : f32
    %127 = vector.broadcast %cst_42 : f32 to vector<8x128xf32>
    %128 = arith.select %126, %127, %119 : vector<8x128xi1>, vector<8x128xf32>
    %129 = arith.truncf %128 : vector<8x128xf32> to vector<8x128xbf16>
    %cst_43 = arith.constant dense<0.000000e+00> : vector<8x128xf32>
    %130 = tpu.matmul %129, %3, %cst_43 {dimension_numbers = #tpu.dot_dimension_numbers<[1], [0], [0], [1], [0, 0, 1, 1], [], []>} : vector<8x128xbf16>, vector<128x128xbf16>, vector<8x128xf32> -> vector<8x128xf32>
    %131 = arith.truncf %81 : vector<8x32xf32> to vector<8x32xbf16>
    %cst_44 = arith.constant dense<0.000000e+00> : vector<8x128xf32>
    %132 = tpu.matmul %131, %4, %cst_44 {dimension_numbers = #tpu.dot_dimension_numbers<[1], [0], [0], [1], [0, 0, 1, 1], [], []>} : vector<8x32xbf16>, vector<32x128xbf16>, vector<8x128xf32> -> vector<8x128xf32>
    %133 = arith.addf %130, %132 : vector<8x128xf32>
    %134 = vector.extract_strided_slice %133 {offsets = [0, 0], sizes = [8, 32], strides = [1, 1]} : vector<8x128xf32> to vector<8x32xf32>
    %135 = arith.negf %134 : vector<8x32xf32>
    %136 = math.exp %135 : vector<8x32xf32>
    %cst_45 = arith.constant 1.000000e+00 : f32
    %137 = vector.broadcast %cst_45 : f32 to vector<8x32xf32>
    %138 = arith.addf %137, %136 : vector<8x32xf32>
    %139 = arith.divf %137, %138 : vector<8x32xf32>
    %140 = vector.extract_strided_slice %133 {offsets = [0, 32], sizes = [8, 32], strides = [1, 1]} : vector<8x128xf32> to vector<8x32xf32>
    %141 = arith.negf %140 : vector<8x32xf32>
    %142 = math.exp %141 : vector<8x32xf32>
    %cst_46 = arith.constant 1.000000e+00 : f32
    %143 = vector.broadcast %cst_46 : f32 to vector<8x32xf32>
    %144 = arith.addf %143, %142 : vector<8x32xf32>
    %145 = arith.divf %143, %144 : vector<8x32xf32>
    %146 = vector.extract_strided_slice %133 {offsets = [0, 64], sizes = [8, 32], strides = [1, 1]} : vector<8x128xf32> to vector<8x32xf32>
    %147 = math.tanh %146 : vector<8x32xf32>
    %148 = vector.extract_strided_slice %133 {offsets = [0, 96], sizes = [8, 32], strides = [1, 1]} : vector<8x128xf32> to vector<8x32xf32>
    %149 = arith.negf %148 : vector<8x32xf32>
    %150 = math.exp %149 : vector<8x32xf32>
    %cst_47 = arith.constant 1.000000e+00 : f32
    %151 = vector.broadcast %cst_47 : f32 to vector<8x32xf32>
    %152 = arith.addf %151, %150 : vector<8x32xf32>
    %153 = arith.divf %151, %152 : vector<8x32xf32>
    %154 = arith.mulf %145, %82 : vector<8x32xf32>
    %155 = arith.mulf %139, %147 : vector<8x32xf32>
    %156 = arith.addf %154, %155 : vector<8x32xf32>
    %157 = math.tanh %156 : vector<8x32xf32>
    %158 = arith.mulf %153, %157 : vector<8x32xf32>
    %c8_i32_48 = arith.constant 8 : i32
    %159 = arith.cmpi slt, %91, %c8_i32_48 : i32
    %160 = arith.select %159, %158, %81 : vector<8x32xf32>
    %161 = arith.select %159, %156, %82 : vector<8x32xf32>
    %162 = arith.truncf %160 : vector<8x32xf32> to vector<8x32xbf16>
    %cst_49 = arith.constant dense<0.000000e+00> : vector<8x128xf32>
    %163 = tpu.matmul %162, %5, %cst_49 {dimension_numbers = #tpu.dot_dimension_numbers<[1], [0], [0], [1], [0, 0, 1, 1], [], []>} : vector<8x32xbf16>, vector<32x128xbf16>, vector<8x128xf32> -> vector<8x128xf32>
    %164 = arith.addf %163, %6 : vector<8x128xf32>
    %165 = arith.index_cast %c1_i32_28 : i32 to index
    %c0_50 = arith.constant 0 : index
    %c0_51 = arith.constant 0 : index
    %166 = vector.load %arg8[%165, %c0_50, %c0_51] : memref<8x8x128xf32, #tpu.memory_space<vmem>>, vector<1x8x128xf32>
    %167 = vector.shape_cast %166 : vector<1x8x128xf32> to vector<8x128xf32>
    %168 = vector.shape_cast %164 : vector<8x128xf32> to vector<1x8x128xf32>
    tpu.vector_store %arg8[%165, %c0_50, %c0_51], %168 {strides = array<i32>} : memref<8x8x128xf32, #tpu.memory_space<vmem>>, vector<1x8x128xf32>,
    %c2_i32_52 = arith.constant 2 : i32
    %c8_i32_53 = arith.constant 8 : i32
    %169 = arith.muli %arg0, %c8_i32_53 : i32
    %170 = arith.addi %169, %c2_i32_52 : i32
    %cst_54 = arith.constant 0.000000e+00 : f32
    %171 = vector.broadcast %cst_54 : f32 to vector<8x128xf32>
    %c0_i32_55 = arith.constant 0 : i32
    %172 = vector.broadcast %c0_i32_55 : i32 to vector<8x128xi32>
    %173 = arith.cmpi eq, %7, %172 : vector<8x128xi32>
    %c0_56 = arith.constant 0 : index
    %174 = arith.index_cast %170 : i32 to index
    %175 = memref.load %arg1[%c0_56, %174] : memref<4x8xi32, #tpu.memory_space<smem>>
    %176 = vector.broadcast %175 : i32 to vector<8x128xi32>
    %177 = arith.cmpi eq, %8, %176 : vector<8x128xi32>
    %178 = arith.andi %173, %177 : vector<8x128xi1>
    %cst_57 = arith.constant 1.000000e+00 : f32
    %179 = vector.broadcast %cst_57 : f32 to vector<8x128xf32>
    %180 = arith.select %178, %179, %171 : vector<8x128xi1>, vector<8x128xf32>
    %c1_i32_58 = arith.constant 1 : i32
    %181 = vector.broadcast %c1_i32_58 : i32 to vector<8x128xi32>
    %182 = arith.cmpi eq, %7, %181 : vector<8x128xi32>
    %c1_59 = arith.constant 1 : index
    %183 = arith.index_cast %170 : i32 to index
    %184 = memref.load %arg1[%c1_59, %183] : memref<4x8xi32, #tpu.memory_space<smem>>
    %185 = vector.broadcast %184 : i32 to vector<8x128xi32>
    %186 = arith.cmpi eq, %8, %185 : vector<8x128xi32>
    %187 = arith.andi %182, %186 : vector<8x128xi1>
    %cst_60 = arith.constant 1.000000e+00 : f32
    %188 = vector.broadcast %cst_60 : f32 to vector<8x128xf32>
    %189 = arith.select %187, %188, %180 : vector<8x128xi1>, vector<8x128xf32>
    %c2_i32_61 = arith.constant 2 : i32
    %190 = vector.broadcast %c2_i32_61 : i32 to vector<8x128xi32>
    %191 = arith.cmpi eq, %7, %190 : vector<8x128xi32>
    %c2_62 = arith.constant 2 : index
    %192 = arith.index_cast %170 : i32 to index
    %193 = memref.load %arg1[%c2_62, %192] : memref<4x8xi32, #tpu.memory_space<smem>>
    %194 = vector.broadcast %193 : i32 to vector<8x128xi32>
    %195 = arith.cmpi eq, %8, %194 : vector<8x128xi32>
    %196 = arith.andi %191, %195 : vector<8x128xi1>
    %cst_63 = arith.constant 1.000000e+00 : f32
    %197 = vector.broadcast %cst_63 : f32 to vector<8x128xf32>
    %198 = arith.select %196, %197, %189 : vector<8x128xi1>, vector<8x128xf32>
    %c3_i32_64 = arith.constant 3 : i32
    %199 = vector.broadcast %c3_i32_64 : i32 to vector<8x128xi32>
    %200 = arith.cmpi eq, %7, %199 : vector<8x128xi32>
    %c3_65 = arith.constant 3 : index
    %201 = arith.index_cast %170 : i32 to index
    %202 = memref.load %arg1[%c3_65, %201] : memref<4x8xi32, #tpu.memory_space<smem>>
    %203 = vector.broadcast %202 : i32 to vector<8x128xi32>
    %204 = arith.cmpi eq, %8, %203 : vector<8x128xi32>
    %205 = arith.andi %200, %204 : vector<8x128xi1>
    %cst_66 = arith.constant 1.000000e+00 : f32
    %206 = vector.broadcast %cst_66 : f32 to vector<8x128xf32>
    %207 = arith.select %205, %206, %198 : vector<8x128xi1>, vector<8x128xf32>
    %208 = arith.truncf %207 : vector<8x128xf32> to vector<8x128xbf16>
    %cst_67 = arith.constant dense<0.000000e+00> : vector<8x128xf32>
    %209 = tpu.matmul %208, %3, %cst_67 {dimension_numbers = #tpu.dot_dimension_numbers<[1], [0], [0], [1], [0, 0, 1, 1], [], []>} : vector<8x128xbf16>, vector<128x128xbf16>, vector<8x128xf32> -> vector<8x128xf32>
    %210 = arith.truncf %160 : vector<8x32xf32> to vector<8x32xbf16>
    %cst_68 = arith.constant dense<0.000000e+00> : vector<8x128xf32>
    %211 = tpu.matmul %210, %4, %cst_68 {dimension_numbers = #tpu.dot_dimension_numbers<[1], [0], [0], [1], [0, 0, 1, 1], [], []>} : vector<8x32xbf16>, vector<32x128xbf16>, vector<8x128xf32> -> vector<8x128xf32>
    %212 = arith.addf %209, %211 : vector<8x128xf32>
    %213 = vector.extract_strided_slice %212 {offsets = [0, 0], sizes = [8, 32], strides = [1, 1]} : vector<8x128xf32> to vector<8x32xf32>
    %214 = arith.negf %213 : vector<8x32xf32>
    %215 = math.exp %214 : vector<8x32xf32>
    %cst_69 = arith.constant 1.000000e+00 : f32
    %216 = vector.broadcast %cst_69 : f32 to vector<8x32xf32>
    %217 = arith.addf %216, %215 : vector<8x32xf32>
    %218 = arith.divf %216, %217 : vector<8x32xf32>
    %219 = vector.extract_strided_slice %212 {offsets = [0, 32], sizes = [8, 32], strides = [1, 1]} : vector<8x128xf32> to vector<8x32xf32>
    %220 = arith.negf %219 : vector<8x32xf32>
    %221 = math.exp %220 : vector<8x32xf32>
    %cst_70 = arith.constant 1.000000e+00 : f32
    %222 = vector.broadcast %cst_70 : f32 to vector<8x32xf32>
    %223 = arith.addf %222, %221 : vector<8x32xf32>
    %224 = arith.divf %222, %223 : vector<8x32xf32>
    %225 = vector.extract_strided_slice %212 {offsets = [0, 64], sizes = [8, 32], strides = [1, 1]} : vector<8x128xf32> to vector<8x32xf32>
    %226 = math.tanh %225 : vector<8x32xf32>
    %227 = vector.extract_strided_slice %212 {offsets = [0, 96], sizes = [8, 32], strides = [1, 1]} : vector<8x128xf32> to vector<8x32xf32>
    %228 = arith.negf %227 : vector<8x32xf32>
    %229 = math.exp %228 : vector<8x32xf32>
    %cst_71 = arith.constant 1.000000e+00 : f32
    %230 = vector.broadcast %cst_71 : f32 to vector<8x32xf32>
    %231 = arith.addf %230, %229 : vector<8x32xf32>
    %232 = arith.divf %230, %231 : vector<8x32xf32>
    %233 = arith.mulf %224, %161 : vector<8x32xf32>
    %234 = arith.mulf %218, %226 : vector<8x32xf32>
    %235 = arith.addf %233, %234 : vector<8x32xf32>
    %236 = math.tanh %235 : vector<8x32xf32>
    %237 = arith.mulf %232, %236 : vector<8x32xf32>
    %c8_i32_72 = arith.constant 8 : i32
    %238 = arith.cmpi slt, %170, %c8_i32_72 : i32
    %239 = arith.select %238, %237, %160 : vector<8x32xf32>
    %240 = arith.select %238, %235, %161 : vector<8x32xf32>
    %241 = arith.truncf %239 : vector<8x32xf32> to vector<8x32xbf16>
    %cst_73 = arith.constant dense<0.000000e+00> : vector<8x128xf32>
    %242 = tpu.matmul %241, %5, %cst_73 {dimension_numbers = #tpu.dot_dimension_numbers<[1], [0], [0], [1], [0, 0, 1, 1], [], []>} : vector<8x32xbf16>, vector<32x128xbf16>, vector<8x128xf32> -> vector<8x128xf32>
    %243 = arith.addf %242, %6 : vector<8x128xf32>
    %244 = arith.index_cast %c2_i32_52 : i32 to index
    %c0_74 = arith.constant 0 : index
    %c0_75 = arith.constant 0 : index
    %245 = vector.load %arg8[%244, %c0_74, %c0_75] : memref<8x8x128xf32, #tpu.memory_space<vmem>>, vector<1x8x128xf32>
    %246 = vector.shape_cast %245 : vector<1x8x128xf32> to vector<8x128xf32>
    %247 = vector.shape_cast %243 : vector<8x128xf32> to vector<1x8x128xf32>
    tpu.vector_store %arg8[%244, %c0_74, %c0_75], %247 {strides = array<i32>} : memref<8x8x128xf32, #tpu.memory_space<vmem>>, vector<1x8x128xf32>,
    %c3_i32_76 = arith.constant 3 : i32
    %c8_i32_77 = arith.constant 8 : i32
    %248 = arith.muli %arg0, %c8_i32_77 : i32
    %249 = arith.addi %248, %c3_i32_76 : i32
    %cst_78 = arith.constant 0.000000e+00 : f32
    %250 = vector.broadcast %cst_78 : f32 to vector<8x128xf32>
    %c0_i32_79 = arith.constant 0 : i32
    %251 = vector.broadcast %c0_i32_79 : i32 to vector<8x128xi32>
    %252 = arith.cmpi eq, %7, %251 : vector<8x128xi32>
    %c0_80 = arith.constant 0 : index
    %253 = arith.index_cast %249 : i32 to index
    %254 = memref.load %arg1[%c0_80, %253] : memref<4x8xi32, #tpu.memory_space<smem>>
    %255 = vector.broadcast %254 : i32 to vector<8x128xi32>
    %256 = arith.cmpi eq, %8, %255 : vector<8x128xi32>
    %257 = arith.andi %252, %256 : vector<8x128xi1>
    %cst_81 = arith.constant 1.000000e+00 : f32
    %258 = vector.broadcast %cst_81 : f32 to vector<8x128xf32>
    %259 = arith.select %257, %258, %250 : vector<8x128xi1>, vector<8x128xf32>
    %c1_i32_82 = arith.constant 1 : i32
    %260 = vector.broadcast %c1_i32_82 : i32 to vector<8x128xi32>
    %261 = arith.cmpi eq, %7, %260 : vector<8x128xi32>
    %c1_83 = arith.constant 1 : index
    %262 = arith.index_cast %249 : i32 to index
    %263 = memref.load %arg1[%c1_83, %262] : memref<4x8xi32, #tpu.memory_space<smem>>
    %264 = vector.broadcast %263 : i32 to vector<8x128xi32>
    %265 = arith.cmpi eq, %8, %264 : vector<8x128xi32>
    %266 = arith.andi %261, %265 : vector<8x128xi1>
    %cst_84 = arith.constant 1.000000e+00 : f32
    %267 = vector.broadcast %cst_84 : f32 to vector<8x128xf32>
    %268 = arith.select %266, %267, %259 : vector<8x128xi1>, vector<8x128xf32>
    %c2_i32_85 = arith.constant 2 : i32
    %269 = vector.broadcast %c2_i32_85 : i32 to vector<8x128xi32>
    %270 = arith.cmpi eq, %7, %269 : vector<8x128xi32>
    %c2_86 = arith.constant 2 : index
    %271 = arith.index_cast %249 : i32 to index
    %272 = memref.load %arg1[%c2_86, %271] : memref<4x8xi32, #tpu.memory_space<smem>>
    %273 = vector.broadcast %272 : i32 to vector<8x128xi32>
    %274 = arith.cmpi eq, %8, %273 : vector<8x128xi32>
    %275 = arith.andi %270, %274 : vector<8x128xi1>
    %cst_87 = arith.constant 1.000000e+00 : f32
    %276 = vector.broadcast %cst_87 : f32 to vector<8x128xf32>
    %277 = arith.select %275, %276, %268 : vector<8x128xi1>, vector<8x128xf32>
    %c3_i32_88 = arith.constant 3 : i32
    %278 = vector.broadcast %c3_i32_88 : i32 to vector<8x128xi32>
    %279 = arith.cmpi eq, %7, %278 : vector<8x128xi32>
    %c3_89 = arith.constant 3 : index
    %280 = arith.index_cast %249 : i32 to index
    %281 = memref.load %arg1[%c3_89, %280] : memref<4x8xi32, #tpu.memory_space<smem>>
    %282 = vector.broadcast %281 : i32 to vector<8x128xi32>
    %283 = arith.cmpi eq, %8, %282 : vector<8x128xi32>
    %284 = arith.andi %279, %283 : vector<8x128xi1>
    %cst_90 = arith.constant 1.000000e+00 : f32
    %285 = vector.broadcast %cst_90 : f32 to vector<8x128xf32>
    %286 = arith.select %284, %285, %277 : vector<8x128xi1>, vector<8x128xf32>
    %287 = arith.truncf %286 : vector<8x128xf32> to vector<8x128xbf16>
    %cst_91 = arith.constant dense<0.000000e+00> : vector<8x128xf32>
    %288 = tpu.matmul %287, %3, %cst_91 {dimension_numbers = #tpu.dot_dimension_numbers<[1], [0], [0], [1], [0, 0, 1, 1], [], []>} : vector<8x128xbf16>, vector<128x128xbf16>, vector<8x128xf32> -> vector<8x128xf32>
    %289 = arith.truncf %239 : vector<8x32xf32> to vector<8x32xbf16>
    %cst_92 = arith.constant dense<0.000000e+00> : vector<8x128xf32>
    %290 = tpu.matmul %289, %4, %cst_92 {dimension_numbers = #tpu.dot_dimension_numbers<[1], [0], [0], [1], [0, 0, 1, 1], [], []>} : vector<8x32xbf16>, vector<32x128xbf16>, vector<8x128xf32> -> vector<8x128xf32>
    %291 = arith.addf %288, %290 : vector<8x128xf32>
    %292 = vector.extract_strided_slice %291 {offsets = [0, 0], sizes = [8, 32], strides = [1, 1]} : vector<8x128xf32> to vector<8x32xf32>
    %293 = arith.negf %292 : vector<8x32xf32>
    %294 = math.exp %293 : vector<8x32xf32>
    %cst_93 = arith.constant 1.000000e+00 : f32
    %295 = vector.broadcast %cst_93 : f32 to vector<8x32xf32>
    %296 = arith.addf %295, %294 : vector<8x32xf32>
    %297 = arith.divf %295, %296 : vector<8x32xf32>
    %298 = vector.extract_strided_slice %291 {offsets = [0, 32], sizes = [8, 32], strides = [1, 1]} : vector<8x128xf32> to vector<8x32xf32>
    %299 = arith.negf %298 : vector<8x32xf32>
    %300 = math.exp %299 : vector<8x32xf32>
    %cst_94 = arith.constant 1.000000e+00 : f32
    %301 = vector.broadcast %cst_94 : f32 to vector<8x32xf32>
    %302 = arith.addf %301, %300 : vector<8x32xf32>
    %303 = arith.divf %301, %302 : vector<8x32xf32>
    %304 = vector.extract_strided_slice %291 {offsets = [0, 64], sizes = [8, 32], strides = [1, 1]} : vector<8x128xf32> to vector<8x32xf32>
    %305 = math.tanh %304 : vector<8x32xf32>
    %306 = vector.extract_strided_slice %291 {offsets = [0, 96], sizes = [8, 32], strides = [1, 1]} : vector<8x128xf32> to vector<8x32xf32>
    %307 = arith.negf %306 : vector<8x32xf32>
    %308 = math.exp %307 : vector<8x32xf32>
    %cst_95 = arith.constant 1.000000e+00 : f32
    %309 = vector.broadcast %cst_95 : f32 to vector<8x32xf32>
    %310 = arith.addf %309, %308 : vector<8x32xf32>
    %311 = arith.divf %309, %310 : vector<8x32xf32>
    %312 = arith.mulf %303, %240 : vector<8x32xf32>
    %313 = arith.mulf %297, %305 : vector<8x32xf32>
    %314 = arith.addf %312, %313 : vector<8x32xf32>
    %315 = math.tanh %314 : vector<8x32xf32>
    %316 = arith.mulf %311, %315 : vector<8x32xf32>
    %c8_i32_96 = arith.constant 8 : i32
    %317 = arith.cmpi slt, %249, %c8_i32_96 : i32
    %318 = arith.select %317, %316, %239 : vector<8x32xf32>
    %319 = arith.select %317, %314, %240 : vector<8x32xf32>
    %320 = arith.truncf %318 : vector<8x32xf32> to vector<8x32xbf16>
    %cst_97 = arith.constant dense<0.000000e+00> : vector<8x128xf32>
    %321 = tpu.matmul %320, %5, %cst_97 {dimension_numbers = #tpu.dot_dimension_numbers<[1], [0], [0], [1], [0, 0, 1, 1], [], []>} : vector<8x32xbf16>, vector<32x128xbf16>, vector<8x128xf32> -> vector<8x128xf32>
    %322 = arith.addf %321, %6 : vector<8x128xf32>
    %323 = arith.index_cast %c3_i32_76 : i32 to index
    %c0_98 = arith.constant 0 : index
    %c0_99 = arith.constant 0 : index
    %324 = vector.load %arg8[%323, %c0_98, %c0_99] : memref<8x8x128xf32, #tpu.memory_space<vmem>>, vector<1x8x128xf32>
    %325 = vector.shape_cast %324 : vector<1x8x128xf32> to vector<8x128xf32>
    %326 = vector.shape_cast %322 : vector<8x128xf32> to vector<1x8x128xf32>
    tpu.vector_store %arg8[%323, %c0_98, %c0_99], %326 {strides = array<i32>} : memref<8x8x128xf32, #tpu.memory_space<vmem>>, vector<1x8x128xf32>,
    %c4_i32 = arith.constant 4 : i32
    %c8_i32_100 = arith.constant 8 : i32
    %327 = arith.muli %arg0, %c8_i32_100 : i32
    %328 = arith.addi %327, %c4_i32 : i32
    %cst_101 = arith.constant 0.000000e+00 : f32
    %329 = vector.broadcast %cst_101 : f32 to vector<8x128xf32>
    %c0_i32_102 = arith.constant 0 : i32
    %330 = vector.broadcast %c0_i32_102 : i32 to vector<8x128xi32>
    %331 = arith.cmpi eq, %7, %330 : vector<8x128xi32>
    %c0_103 = arith.constant 0 : index
    %332 = arith.index_cast %328 : i32 to index
    %333 = memref.load %arg1[%c0_103, %332] : memref<4x8xi32, #tpu.memory_space<smem>>
    %334 = vector.broadcast %333 : i32 to vector<8x128xi32>
    %335 = arith.cmpi eq, %8, %334 : vector<8x128xi32>
    %336 = arith.andi %331, %335 : vector<8x128xi1>
    %cst_104 = arith.constant 1.000000e+00 : f32
    %337 = vector.broadcast %cst_104 : f32 to vector<8x128xf32>
    %338 = arith.select %336, %337, %329 : vector<8x128xi1>, vector<8x128xf32>
    %c1_i32_105 = arith.constant 1 : i32
    %339 = vector.broadcast %c1_i32_105 : i32 to vector<8x128xi32>
    %340 = arith.cmpi eq, %7, %339 : vector<8x128xi32>
    %c1_106 = arith.constant 1 : index
    %341 = arith.index_cast %328 : i32 to index
    %342 = memref.load %arg1[%c1_106, %341] : memref<4x8xi32, #tpu.memory_space<smem>>
    %343 = vector.broadcast %342 : i32 to vector<8x128xi32>
    %344 = arith.cmpi eq, %8, %343 : vector<8x128xi32>
    %345 = arith.andi %340, %344 : vector<8x128xi1>
    %cst_107 = arith.constant 1.000000e+00 : f32
    %346 = vector.broadcast %cst_107 : f32 to vector<8x128xf32>
    %347 = arith.select %345, %346, %338 : vector<8x128xi1>, vector<8x128xf32>
    %c2_i32_108 = arith.constant 2 : i32
    %348 = vector.broadcast %c2_i32_108 : i32 to vector<8x128xi32>
    %349 = arith.cmpi eq, %7, %348 : vector<8x128xi32>
    %c2_109 = arith.constant 2 : index
    %350 = arith.index_cast %328 : i32 to index
    %351 = memref.load %arg1[%c2_109, %350] : memref<4x8xi32, #tpu.memory_space<smem>>
    %352 = vector.broadcast %351 : i32 to vector<8x128xi32>
    %353 = arith.cmpi eq, %8, %352 : vector<8x128xi32>
    %354 = arith.andi %349, %353 : vector<8x128xi1>
    %cst_110 = arith.constant 1.000000e+00 : f32
    %355 = vector.broadcast %cst_110 : f32 to vector<8x128xf32>
    %356 = arith.select %354, %355, %347 : vector<8x128xi1>, vector<8x128xf32>
    %c3_i32_111 = arith.constant 3 : i32
    %357 = vector.broadcast %c3_i32_111 : i32 to vector<8x128xi32>
    %358 = arith.cmpi eq, %7, %357 : vector<8x128xi32>
    %c3_112 = arith.constant 3 : index
    %359 = arith.index_cast %328 : i32 to index
    %360 = memref.load %arg1[%c3_112, %359] : memref<4x8xi32, #tpu.memory_space<smem>>
    %361 = vector.broadcast %360 : i32 to vector<8x128xi32>
    %362 = arith.cmpi eq, %8, %361 : vector<8x128xi32>
    %363 = arith.andi %358, %362 : vector<8x128xi1>
    %cst_113 = arith.constant 1.000000e+00 : f32
    %364 = vector.broadcast %cst_113 : f32 to vector<8x128xf32>
    %365 = arith.select %363, %364, %356 : vector<8x128xi1>, vector<8x128xf32>
    %366 = arith.truncf %365 : vector<8x128xf32> to vector<8x128xbf16>
    %cst_114 = arith.constant dense<0.000000e+00> : vector<8x128xf32>
    %367 = tpu.matmul %366, %3, %cst_114 {dimension_numbers = #tpu.dot_dimension_numbers<[1], [0], [0], [1], [0, 0, 1, 1], [], []>} : vector<8x128xbf16>, vector<128x128xbf16>, vector<8x128xf32> -> vector<8x128xf32>
    %368 = arith.truncf %318 : vector<8x32xf32> to vector<8x32xbf16>
    %cst_115 = arith.constant dense<0.000000e+00> : vector<8x128xf32>
    %369 = tpu.matmul %368, %4, %cst_115 {dimension_numbers = #tpu.dot_dimension_numbers<[1], [0], [0], [1], [0, 0, 1, 1], [], []>} : vector<8x32xbf16>, vector<32x128xbf16>, vector<8x128xf32> -> vector<8x128xf32>
    %370 = arith.addf %367, %369 : vector<8x128xf32>
    %371 = vector.extract_strided_slice %370 {offsets = [0, 0], sizes = [8, 32], strides = [1, 1]} : vector<8x128xf32> to vector<8x32xf32>
    %372 = arith.negf %371 : vector<8x32xf32>
    %373 = math.exp %372 : vector<8x32xf32>
    %cst_116 = arith.constant 1.000000e+00 : f32
    %374 = vector.broadcast %cst_116 : f32 to vector<8x32xf32>
    %375 = arith.addf %374, %373 : vector<8x32xf32>
    %376 = arith.divf %374, %375 : vector<8x32xf32>
    %377 = vector.extract_strided_slice %370 {offsets = [0, 32], sizes = [8, 32], strides = [1, 1]} : vector<8x128xf32> to vector<8x32xf32>
    %378 = arith.negf %377 : vector<8x32xf32>
    %379 = math.exp %378 : vector<8x32xf32>
    %cst_117 = arith.constant 1.000000e+00 : f32
    %380 = vector.broadcast %cst_117 : f32 to vector<8x32xf32>
    %381 = arith.addf %380, %379 : vector<8x32xf32>
    %382 = arith.divf %380, %381 : vector<8x32xf32>
    %383 = vector.extract_strided_slice %370 {offsets = [0, 64], sizes = [8, 32], strides = [1, 1]} : vector<8x128xf32> to vector<8x32xf32>
    %384 = math.tanh %383 : vector<8x32xf32>
    %385 = vector.extract_strided_slice %370 {offsets = [0, 96], sizes = [8, 32], strides = [1, 1]} : vector<8x128xf32> to vector<8x32xf32>
    %386 = arith.negf %385 : vector<8x32xf32>
    %387 = math.exp %386 : vector<8x32xf32>
    %cst_118 = arith.constant 1.000000e+00 : f32
    %388 = vector.broadcast %cst_118 : f32 to vector<8x32xf32>
    %389 = arith.addf %388, %387 : vector<8x32xf32>
    %390 = arith.divf %388, %389 : vector<8x32xf32>
    %391 = arith.mulf %382, %319 : vector<8x32xf32>
    %392 = arith.mulf %376, %384 : vector<8x32xf32>
    %393 = arith.addf %391, %392 : vector<8x32xf32>
    %394 = math.tanh %393 : vector<8x32xf32>
    %395 = arith.mulf %390, %394 : vector<8x32xf32>
    %c8_i32_119 = arith.constant 8 : i32
    %396 = arith.cmpi slt, %328, %c8_i32_119 : i32
    %397 = arith.select %396, %395, %318 : vector<8x32xf32>
    %398 = arith.select %396, %393, %319 : vector<8x32xf32>
    %399 = arith.truncf %397 : vector<8x32xf32> to vector<8x32xbf16>
    %cst_120 = arith.constant dense<0.000000e+00> : vector<8x128xf32>
    %400 = tpu.matmul %399, %5, %cst_120 {dimension_numbers = #tpu.dot_dimension_numbers<[1], [0], [0], [1], [0, 0, 1, 1], [], []>} : vector<8x32xbf16>, vector<32x128xbf16>, vector<8x128xf32> -> vector<8x128xf32>
    %401 = arith.addf %400, %6 : vector<8x128xf32>
    %402 = arith.index_cast %c4_i32 : i32 to index
    %c0_121 = arith.constant 0 : index
    %c0_122 = arith.constant 0 : index
    %403 = vector.load %arg8[%402, %c0_121, %c0_122] : memref<8x8x128xf32, #tpu.memory_space<vmem>>, vector<1x8x128xf32>
    %404 = vector.shape_cast %403 : vector<1x8x128xf32> to vector<8x128xf32>
    %405 = vector.shape_cast %401 : vector<8x128xf32> to vector<1x8x128xf32>
    tpu.vector_store %arg8[%402, %c0_121, %c0_122], %405 {strides = array<i32>} : memref<8x8x128xf32, #tpu.memory_space<vmem>>, vector<1x8x128xf32>,
    %c5_i32 = arith.constant 5 : i32
    %c8_i32_123 = arith.constant 8 : i32
    %406 = arith.muli %arg0, %c8_i32_123 : i32
    %407 = arith.addi %406, %c5_i32 : i32
    %cst_124 = arith.constant 0.000000e+00 : f32
    %408 = vector.broadcast %cst_124 : f32 to vector<8x128xf32>
    %c0_i32_125 = arith.constant 0 : i32
    %409 = vector.broadcast %c0_i32_125 : i32 to vector<8x128xi32>
    %410 = arith.cmpi eq, %7, %409 : vector<8x128xi32>
    %c0_126 = arith.constant 0 : index
    %411 = arith.index_cast %407 : i32 to index
    %412 = memref.load %arg1[%c0_126, %411] : memref<4x8xi32, #tpu.memory_space<smem>>
    %413 = vector.broadcast %412 : i32 to vector<8x128xi32>
    %414 = arith.cmpi eq, %8, %413 : vector<8x128xi32>
    %415 = arith.andi %410, %414 : vector<8x128xi1>
    %cst_127 = arith.constant 1.000000e+00 : f32
    %416 = vector.broadcast %cst_127 : f32 to vector<8x128xf32>
    %417 = arith.select %415, %416, %408 : vector<8x128xi1>, vector<8x128xf32>
    %c1_i32_128 = arith.constant 1 : i32
    %418 = vector.broadcast %c1_i32_128 : i32 to vector<8x128xi32>
    %419 = arith.cmpi eq, %7, %418 : vector<8x128xi32>
    %c1_129 = arith.constant 1 : index
    %420 = arith.index_cast %407 : i32 to index
    %421 = memref.load %arg1[%c1_129, %420] : memref<4x8xi32, #tpu.memory_space<smem>>
    %422 = vector.broadcast %421 : i32 to vector<8x128xi32>
    %423 = arith.cmpi eq, %8, %422 : vector<8x128xi32>
    %424 = arith.andi %419, %423 : vector<8x128xi1>
    %cst_130 = arith.constant 1.000000e+00 : f32
    %425 = vector.broadcast %cst_130 : f32 to vector<8x128xf32>
    %426 = arith.select %424, %425, %417 : vector<8x128xi1>, vector<8x128xf32>
    %c2_i32_131 = arith.constant 2 : i32
    %427 = vector.broadcast %c2_i32_131 : i32 to vector<8x128xi32>
    %428 = arith.cmpi eq, %7, %427 : vector<8x128xi32>
    %c2_132 = arith.constant 2 : index
    %429 = arith.index_cast %407 : i32 to index
    %430 = memref.load %arg1[%c2_132, %429] : memref<4x8xi32, #tpu.memory_space<smem>>
    %431 = vector.broadcast %430 : i32 to vector<8x128xi32>
    %432 = arith.cmpi eq, %8, %431 : vector<8x128xi32>
    %433 = arith.andi %428, %432 : vector<8x128xi1>
    %cst_133 = arith.constant 1.000000e+00 : f32
    %434 = vector.broadcast %cst_133 : f32 to vector<8x128xf32>
    %435 = arith.select %433, %434, %426 : vector<8x128xi1>, vector<8x128xf32>
    %c3_i32_134 = arith.constant 3 : i32
    %436 = vector.broadcast %c3_i32_134 : i32 to vector<8x128xi32>
    %437 = arith.cmpi eq, %7, %436 : vector<8x128xi32>
    %c3_135 = arith.constant 3 : index
    %438 = arith.index_cast %407 : i32 to index
    %439 = memref.load %arg1[%c3_135, %438] : memref<4x8xi32, #tpu.memory_space<smem>>
    %440 = vector.broadcast %439 : i32 to vector<8x128xi32>
    %441 = arith.cmpi eq, %8, %440 : vector<8x128xi32>
    %442 = arith.andi %437, %441 : vector<8x128xi1>
    %cst_136 = arith.constant 1.000000e+00 : f32
    %443 = vector.broadcast %cst_136 : f32 to vector<8x128xf32>
    %444 = arith.select %442, %443, %435 : vector<8x128xi1>, vector<8x128xf32>
    %445 = arith.truncf %444 : vector<8x128xf32> to vector<8x128xbf16>
    %cst_137 = arith.constant dense<0.000000e+00> : vector<8x128xf32>
    %446 = tpu.matmul %445, %3, %cst_137 {dimension_numbers = #tpu.dot_dimension_numbers<[1], [0], [0], [1], [0, 0, 1, 1], [], []>} : vector<8x128xbf16>, vector<128x128xbf16>, vector<8x128xf32> -> vector<8x128xf32>
    %447 = arith.truncf %397 : vector<8x32xf32> to vector<8x32xbf16>
    %cst_138 = arith.constant dense<0.000000e+00> : vector<8x128xf32>
    %448 = tpu.matmul %447, %4, %cst_138 {dimension_numbers = #tpu.dot_dimension_numbers<[1], [0], [0], [1], [0, 0, 1, 1], [], []>} : vector<8x32xbf16>, vector<32x128xbf16>, vector<8x128xf32> -> vector<8x128xf32>
    %449 = arith.addf %446, %448 : vector<8x128xf32>
    %450 = vector.extract_strided_slice %449 {offsets = [0, 0], sizes = [8, 32], strides = [1, 1]} : vector<8x128xf32> to vector<8x32xf32>
    %451 = arith.negf %450 : vector<8x32xf32>
    %452 = math.exp %451 : vector<8x32xf32>
    %cst_139 = arith.constant 1.000000e+00 : f32
    %453 = vector.broadcast %cst_139 : f32 to vector<8x32xf32>
    %454 = arith.addf %453, %452 : vector<8x32xf32>
    %455 = arith.divf %453, %454 : vector<8x32xf32>
    %456 = vector.extract_strided_slice %449 {offsets = [0, 32], sizes = [8, 32], strides = [1, 1]} : vector<8x128xf32> to vector<8x32xf32>
    %457 = arith.negf %456 : vector<8x32xf32>
    %458 = math.exp %457 : vector<8x32xf32>
    %cst_140 = arith.constant 1.000000e+00 : f32
    %459 = vector.broadcast %cst_140 : f32 to vector<8x32xf32>
    %460 = arith.addf %459, %458 : vector<8x32xf32>
    %461 = arith.divf %459, %460 : vector<8x32xf32>
    %462 = vector.extract_strided_slice %449 {offsets = [0, 64], sizes = [8, 32], strides = [1, 1]} : vector<8x128xf32> to vector<8x32xf32>
    %463 = math.tanh %462 : vector<8x32xf32>
    %464 = vector.extract_strided_slice %449 {offsets = [0, 96], sizes = [8, 32], strides = [1, 1]} : vector<8x128xf32> to vector<8x32xf32>
    %465 = arith.negf %464 : vector<8x32xf32>
    %466 = math.exp %465 : vector<8x32xf32>
    %cst_141 = arith.constant 1.000000e+00 : f32
    %467 = vector.broadcast %cst_141 : f32 to vector<8x32xf32>
    %468 = arith.addf %467, %466 : vector<8x32xf32>
    %469 = arith.divf %467, %468 : vector<8x32xf32>
    %470 = arith.mulf %461, %398 : vector<8x32xf32>
    %471 = arith.mulf %455, %463 : vector<8x32xf32>
    %472 = arith.addf %470, %471 : vector<8x32xf32>
    %473 = math.tanh %472 : vector<8x32xf32>
    %474 = arith.mulf %469, %473 : vector<8x32xf32>
    %c8_i32_142 = arith.constant 8 : i32
    %475 = arith.cmpi slt, %407, %c8_i32_142 : i32
    %476 = arith.select %475, %474, %397 : vector<8x32xf32>
    %477 = arith.select %475, %472, %398 : vector<8x32xf32>
    %478 = arith.truncf %476 : vector<8x32xf32> to vector<8x32xbf16>
    %cst_143 = arith.constant dense<0.000000e+00> : vector<8x128xf32>
    %479 = tpu.matmul %478, %5, %cst_143 {dimension_numbers = #tpu.dot_dimension_numbers<[1], [0], [0], [1], [0, 0, 1, 1], [], []>} : vector<8x32xbf16>, vector<32x128xbf16>, vector<8x128xf32> -> vector<8x128xf32>
    %480 = arith.addf %479, %6 : vector<8x128xf32>
    %481 = arith.index_cast %c5_i32 : i32 to index
    %c0_144 = arith.constant 0 : index
    %c0_145 = arith.constant 0 : index
    %482 = vector.load %arg8[%481, %c0_144, %c0_145] : memref<8x8x128xf32, #tpu.memory_space<vmem>>, vector<1x8x128xf32>
    %483 = vector.shape_cast %482 : vector<1x8x128xf32> to vector<8x128xf32>
    %484 = vector.shape_cast %480 : vector<8x128xf32> to vector<1x8x128xf32>
    tpu.vector_store %arg8[%481, %c0_144, %c0_145], %484 {strides = array<i32>} : memref<8x8x128xf32, #tpu.memory_space<vmem>>, vector<1x8x128xf32>,
    %c6_i32 = arith.constant 6 : i32
    %c8_i32_146 = arith.constant 8 : i32
    %485 = arith.muli %arg0, %c8_i32_146 : i32
    %486 = arith.addi %485, %c6_i32 : i32
    %cst_147 = arith.constant 0.000000e+00 : f32
    %487 = vector.broadcast %cst_147 : f32 to vector<8x128xf32>
    %c0_i32_148 = arith.constant 0 : i32
    %488 = vector.broadcast %c0_i32_148 : i32 to vector<8x128xi32>
    %489 = arith.cmpi eq, %7, %488 : vector<8x128xi32>
    %c0_149 = arith.constant 0 : index
    %490 = arith.index_cast %486 : i32 to index
    %491 = memref.load %arg1[%c0_149, %490] : memref<4x8xi32, #tpu.memory_space<smem>>
    %492 = vector.broadcast %491 : i32 to vector<8x128xi32>
    %493 = arith.cmpi eq, %8, %492 : vector<8x128xi32>
    %494 = arith.andi %489, %493 : vector<8x128xi1>
    %cst_150 = arith.constant 1.000000e+00 : f32
    %495 = vector.broadcast %cst_150 : f32 to vector<8x128xf32>
    %496 = arith.select %494, %495, %487 : vector<8x128xi1>, vector<8x128xf32>
    %c1_i32_151 = arith.constant 1 : i32
    %497 = vector.broadcast %c1_i32_151 : i32 to vector<8x128xi32>
    %498 = arith.cmpi eq, %7, %497 : vector<8x128xi32>
    %c1_152 = arith.constant 1 : index
    %499 = arith.index_cast %486 : i32 to index
    %500 = memref.load %arg1[%c1_152, %499] : memref<4x8xi32, #tpu.memory_space<smem>>
    %501 = vector.broadcast %500 : i32 to vector<8x128xi32>
    %502 = arith.cmpi eq, %8, %501 : vector<8x128xi32>
    %503 = arith.andi %498, %502 : vector<8x128xi1>
    %cst_153 = arith.constant 1.000000e+00 : f32
    %504 = vector.broadcast %cst_153 : f32 to vector<8x128xf32>
    %505 = arith.select %503, %504, %496 : vector<8x128xi1>, vector<8x128xf32>
    %c2_i32_154 = arith.constant 2 : i32
    %506 = vector.broadcast %c2_i32_154 : i32 to vector<8x128xi32>
    %507 = arith.cmpi eq, %7, %506 : vector<8x128xi32>
    %c2_155 = arith.constant 2 : index
    %508 = arith.index_cast %486 : i32 to index
    %509 = memref.load %arg1[%c2_155, %508] : memref<4x8xi32, #tpu.memory_space<smem>>
    %510 = vector.broadcast %509 : i32 to vector<8x128xi32>
    %511 = arith.cmpi eq, %8, %510 : vector<8x128xi32>
    %512 = arith.andi %507, %511 : vector<8x128xi1>
    %cst_156 = arith.constant 1.000000e+00 : f32
    %513 = vector.broadcast %cst_156 : f32 to vector<8x128xf32>
    %514 = arith.select %512, %513, %505 : vector<8x128xi1>, vector<8x128xf32>
    %c3_i32_157 = arith.constant 3 : i32
    %515 = vector.broadcast %c3_i32_157 : i32 to vector<8x128xi32>
    %516 = arith.cmpi eq, %7, %515 : vector<8x128xi32>
    %c3_158 = arith.constant 3 : index
    %517 = arith.index_cast %486 : i32 to index
    %518 = memref.load %arg1[%c3_158, %517] : memref<4x8xi32, #tpu.memory_space<smem>>
    %519 = vector.broadcast %518 : i32 to vector<8x128xi32>
    %520 = arith.cmpi eq, %8, %519 : vector<8x128xi32>
    %521 = arith.andi %516, %520 : vector<8x128xi1>
    %cst_159 = arith.constant 1.000000e+00 : f32
    %522 = vector.broadcast %cst_159 : f32 to vector<8x128xf32>
    %523 = arith.select %521, %522, %514 : vector<8x128xi1>, vector<8x128xf32>
    %524 = arith.truncf %523 : vector<8x128xf32> to vector<8x128xbf16>
    %cst_160 = arith.constant dense<0.000000e+00> : vector<8x128xf32>
    %525 = tpu.matmul %524, %3, %cst_160 {dimension_numbers = #tpu.dot_dimension_numbers<[1], [0], [0], [1], [0, 0, 1, 1], [], []>} : vector<8x128xbf16>, vector<128x128xbf16>, vector<8x128xf32> -> vector<8x128xf32>
    %526 = arith.truncf %476 : vector<8x32xf32> to vector<8x32xbf16>
    %cst_161 = arith.constant dense<0.000000e+00> : vector<8x128xf32>
    %527 = tpu.matmul %526, %4, %cst_161 {dimension_numbers = #tpu.dot_dimension_numbers<[1], [0], [0], [1], [0, 0, 1, 1], [], []>} : vector<8x32xbf16>, vector<32x128xbf16>, vector<8x128xf32> -> vector<8x128xf32>
    %528 = arith.addf %525, %527 : vector<8x128xf32>
    %529 = vector.extract_strided_slice %528 {offsets = [0, 0], sizes = [8, 32], strides = [1, 1]} : vector<8x128xf32> to vector<8x32xf32>
    %530 = arith.negf %529 : vector<8x32xf32>
    %531 = math.exp %530 : vector<8x32xf32>
    %cst_162 = arith.constant 1.000000e+00 : f32
    %532 = vector.broadcast %cst_162 : f32 to vector<8x32xf32>
    %533 = arith.addf %532, %531 : vector<8x32xf32>
    %534 = arith.divf %532, %533 : vector<8x32xf32>
    %535 = vector.extract_strided_slice %528 {offsets = [0, 32], sizes = [8, 32], strides = [1, 1]} : vector<8x128xf32> to vector<8x32xf32>
    %536 = arith.negf %535 : vector<8x32xf32>
    %537 = math.exp %536 : vector<8x32xf32>
    %cst_163 = arith.constant 1.000000e+00 : f32
    %538 = vector.broadcast %cst_163 : f32 to vector<8x32xf32>
    %539 = arith.addf %538, %537 : vector<8x32xf32>
    %540 = arith.divf %538, %539 : vector<8x32xf32>
    %541 = vector.extract_strided_slice %528 {offsets = [0, 64], sizes = [8, 32], strides = [1, 1]} : vector<8x128xf32> to vector<8x32xf32>
    %542 = math.tanh %541 : vector<8x32xf32>
    %543 = vector.extract_strided_slice %528 {offsets = [0, 96], sizes = [8, 32], strides = [1, 1]} : vector<8x128xf32> to vector<8x32xf32>
    %544 = arith.negf %543 : vector<8x32xf32>
    %545 = math.exp %544 : vector<8x32xf32>
    %cst_164 = arith.constant 1.000000e+00 : f32
    %546 = vector.broadcast %cst_164 : f32 to vector<8x32xf32>
    %547 = arith.addf %546, %545 : vector<8x32xf32>
    %548 = arith.divf %546, %547 : vector<8x32xf32>
    %549 = arith.mulf %540, %477 : vector<8x32xf32>
    %550 = arith.mulf %534, %542 : vector<8x32xf32>
    %551 = arith.addf %549, %550 : vector<8x32xf32>
    %552 = math.tanh %551 : vector<8x32xf32>
    %553 = arith.mulf %548, %552 : vector<8x32xf32>
    %c8_i32_165 = arith.constant 8 : i32
    %554 = arith.cmpi slt, %486, %c8_i32_165 : i32
    %555 = arith.select %554, %553, %476 : vector<8x32xf32>
    %556 = arith.select %554, %551, %477 : vector<8x32xf32>
    %557 = arith.truncf %555 : vector<8x32xf32> to vector<8x32xbf16>
    %cst_166 = arith.constant dense<0.000000e+00> : vector<8x128xf32>
    %558 = tpu.matmul %557, %5, %cst_166 {dimension_numbers = #tpu.dot_dimension_numbers<[1], [0], [0], [1], [0, 0, 1, 1], [], []>} : vector<8x32xbf16>, vector<32x128xbf16>, vector<8x128xf32> -> vector<8x128xf32>
    %559 = arith.addf %558, %6 : vector<8x128xf32>
    %560 = arith.index_cast %c6_i32 : i32 to index
    %c0_167 = arith.constant 0 : index
    %c0_168 = arith.constant 0 : index
    %561 = vector.load %arg8[%560, %c0_167, %c0_168] : memref<8x8x128xf32, #tpu.memory_space<vmem>>, vector<1x8x128xf32>
    %562 = vector.shape_cast %561 : vector<1x8x128xf32> to vector<8x128xf32>
    %563 = vector.shape_cast %559 : vector<8x128xf32> to vector<1x8x128xf32>
    tpu.vector_store %arg8[%560, %c0_167, %c0_168], %563 {strides = array<i32>} : memref<8x8x128xf32, #tpu.memory_space<vmem>>, vector<1x8x128xf32>,
    %c7_i32 = arith.constant 7 : i32
    %c8_i32_169 = arith.constant 8 : i32
    %564 = arith.muli %arg0, %c8_i32_169 : i32
    %565 = arith.addi %564, %c7_i32 : i32
    %cst_170 = arith.constant 0.000000e+00 : f32
    %566 = vector.broadcast %cst_170 : f32 to vector<8x128xf32>
    %c0_i32_171 = arith.constant 0 : i32
    %567 = vector.broadcast %c0_i32_171 : i32 to vector<8x128xi32>
    %568 = arith.cmpi eq, %7, %567 : vector<8x128xi32>
    %c0_172 = arith.constant 0 : index
    %569 = arith.index_cast %565 : i32 to index
    %570 = memref.load %arg1[%c0_172, %569] : memref<4x8xi32, #tpu.memory_space<smem>>
    %571 = vector.broadcast %570 : i32 to vector<8x128xi32>
    %572 = arith.cmpi eq, %8, %571 : vector<8x128xi32>
    %573 = arith.andi %568, %572 : vector<8x128xi1>
    %cst_173 = arith.constant 1.000000e+00 : f32
    %574 = vector.broadcast %cst_173 : f32 to vector<8x128xf32>
    %575 = arith.select %573, %574, %566 : vector<8x128xi1>, vector<8x128xf32>
    %c1_i32_174 = arith.constant 1 : i32
    %576 = vector.broadcast %c1_i32_174 : i32 to vector<8x128xi32>
    %577 = arith.cmpi eq, %7, %576 : vector<8x128xi32>
    %c1_175 = arith.constant 1 : index
    %578 = arith.index_cast %565 : i32 to index
    %579 = memref.load %arg1[%c1_175, %578] : memref<4x8xi32, #tpu.memory_space<smem>>
    %580 = vector.broadcast %579 : i32 to vector<8x128xi32>
    %581 = arith.cmpi eq, %8, %580 : vector<8x128xi32>
    %582 = arith.andi %577, %581 : vector<8x128xi1>
    %cst_176 = arith.constant 1.000000e+00 : f32
    %583 = vector.broadcast %cst_176 : f32 to vector<8x128xf32>
    %584 = arith.select %582, %583, %575 : vector<8x128xi1>, vector<8x128xf32>
    %c2_i32_177 = arith.constant 2 : i32
    %585 = vector.broadcast %c2_i32_177 : i32 to vector<8x128xi32>
    %586 = arith.cmpi eq, %7, %585 : vector<8x128xi32>
    %c2_178 = arith.constant 2 : index
    %587 = arith.index_cast %565 : i32 to index
    %588 = memref.load %arg1[%c2_178, %587] : memref<4x8xi32, #tpu.memory_space<smem>>
    %589 = vector.broadcast %588 : i32 to vector<8x128xi32>
    %590 = arith.cmpi eq, %8, %589 : vector<8x128xi32>
    %591 = arith.andi %586, %590 : vector<8x128xi1>
    %cst_179 = arith.constant 1.000000e+00 : f32
    %592 = vector.broadcast %cst_179 : f32 to vector<8x128xf32>
    %593 = arith.select %591, %592, %584 : vector<8x128xi1>, vector<8x128xf32>
    %c3_i32_180 = arith.constant 3 : i32
    %594 = vector.broadcast %c3_i32_180 : i32 to vector<8x128xi32>
    %595 = arith.cmpi eq, %7, %594 : vector<8x128xi32>
    %c3_181 = arith.constant 3 : index
    %596 = arith.index_cast %565 : i32 to index
    %597 = memref.load %arg1[%c3_181, %596] : memref<4x8xi32, #tpu.memory_space<smem>>
    %598 = vector.broadcast %597 : i32 to vector<8x128xi32>
    %599 = arith.cmpi eq, %8, %598 : vector<8x128xi32>
    %600 = arith.andi %595, %599 : vector<8x128xi1>
    %cst_182 = arith.constant 1.000000e+00 : f32
    %601 = vector.broadcast %cst_182 : f32 to vector<8x128xf32>
    %602 = arith.select %600, %601, %593 : vector<8x128xi1>, vector<8x128xf32>
    %603 = arith.truncf %602 : vector<8x128xf32> to vector<8x128xbf16>
    %cst_183 = arith.constant dense<0.000000e+00> : vector<8x128xf32>
    %604 = tpu.matmul %603, %3, %cst_183 {dimension_numbers = #tpu.dot_dimension_numbers<[1], [0], [0], [1], [0, 0, 1, 1], [], []>} : vector<8x128xbf16>, vector<128x128xbf16>, vector<8x128xf32> -> vector<8x128xf32>
    %605 = arith.truncf %555 : vector<8x32xf32> to vector<8x32xbf16>
    %cst_184 = arith.constant dense<0.000000e+00> : vector<8x128xf32>
    %606 = tpu.matmul %605, %4, %cst_184 {dimension_numbers = #tpu.dot_dimension_numbers<[1], [0], [0], [1], [0, 0, 1, 1], [], []>} : vector<8x32xbf16>, vector<32x128xbf16>, vector<8x128xf32> -> vector<8x128xf32>
    %607 = arith.addf %604, %606 : vector<8x128xf32>
    %608 = vector.extract_strided_slice %607 {offsets = [0, 0], sizes = [8, 32], strides = [1, 1]} : vector<8x128xf32> to vector<8x32xf32>
    %609 = arith.negf %608 : vector<8x32xf32>
    %610 = math.exp %609 : vector<8x32xf32>
    %cst_185 = arith.constant 1.000000e+00 : f32
    %611 = vector.broadcast %cst_185 : f32 to vector<8x32xf32>
    %612 = arith.addf %611, %610 : vector<8x32xf32>
    %613 = arith.divf %611, %612 : vector<8x32xf32>
    %614 = vector.extract_strided_slice %607 {offsets = [0, 32], sizes = [8, 32], strides = [1, 1]} : vector<8x128xf32> to vector<8x32xf32>
    %615 = arith.negf %614 : vector<8x32xf32>
    %616 = math.exp %615 : vector<8x32xf32>
    %cst_186 = arith.constant 1.000000e+00 : f32
    %617 = vector.broadcast %cst_186 : f32 to vector<8x32xf32>
    %618 = arith.addf %617, %616 : vector<8x32xf32>
    %619 = arith.divf %617, %618 : vector<8x32xf32>
    %620 = vector.extract_strided_slice %607 {offsets = [0, 64], sizes = [8, 32], strides = [1, 1]} : vector<8x128xf32> to vector<8x32xf32>
    %621 = math.tanh %620 : vector<8x32xf32>
    %622 = vector.extract_strided_slice %607 {offsets = [0, 96], sizes = [8, 32], strides = [1, 1]} : vector<8x128xf32> to vector<8x32xf32>
    %623 = arith.negf %622 : vector<8x32xf32>
    %624 = math.exp %623 : vector<8x32xf32>
    %cst_187 = arith.constant 1.000000e+00 : f32
    %625 = vector.broadcast %cst_187 : f32 to vector<8x32xf32>
    %626 = arith.addf %625, %624 : vector<8x32xf32>
    %627 = arith.divf %625, %626 : vector<8x32xf32>
    %628 = arith.mulf %619, %556 : vector<8x32xf32>
    %629 = arith.mulf %613, %621 : vector<8x32xf32>
    %630 = arith.addf %628, %629 : vector<8x32xf32>
    %631 = math.tanh %630 : vector<8x32xf32>
    %632 = arith.mulf %627, %631 : vector<8x32xf32>
    %c8_i32_188 = arith.constant 8 : i32
    %633 = arith.cmpi slt, %565, %c8_i32_188 : i32
    %634 = arith.select %633, %632, %555 : vector<8x32xf32>
    %635 = arith.select %633, %630, %556 : vector<8x32xf32>
    %636 = arith.truncf %634 : vector<8x32xf32> to vector<8x32xbf16>
    %cst_189 = arith.constant dense<0.000000e+00> : vector<8x128xf32>
    %637 = tpu.matmul %636, %5, %cst_189 {dimension_numbers = #tpu.dot_dimension_numbers<[1], [0], [0], [1], [0, 0, 1, 1], [], []>} : vector<8x32xbf16>, vector<32x128xbf16>, vector<8x128xf32> -> vector<8x128xf32>
    %638 = arith.addf %637, %6 : vector<8x128xf32>
    %639 = arith.index_cast %c7_i32 : i32 to index
    %c0_190 = arith.constant 0 : index
    %c0_191 = arith.constant 0 : index
    %640 = vector.load %arg8[%639, %c0_190, %c0_191] : memref<8x8x128xf32, #tpu.memory_space<vmem>>, vector<1x8x128xf32>
    %641 = vector.shape_cast %640 : vector<1x8x128xf32> to vector<8x128xf32>
    %642 = vector.shape_cast %638 : vector<8x128xf32> to vector<1x8x128xf32>
    tpu.vector_store %arg8[%639, %c0_190, %c0_191], %642 {strides = array<i32>} : memref<8x8x128xf32, #tpu.memory_space<vmem>>, vector<1x8x128xf32>,
    %c8_i32_192 = arith.constant 8 : i32
    %c0_193 = arith.constant 0 : index
    %c0_194 = arith.constant 0 : index
    %643 = vector.load %arg9[%c0_193, %c0_194] : memref<8x32xf32, #tpu.memory_space<vmem>>, vector<8x32xf32>
    tpu.vector_store %arg9[%c0_193, %c0_194], %634 {strides = array<i32>} : memref<8x32xf32, #tpu.memory_space<vmem>>, vector<8x32xf32>,
    %c0_195 = arith.constant 0 : index
    %c0_196 = arith.constant 0 : index
    %644 = vector.load %arg10[%c0_195, %c0_196] : memref<8x32xf32, #tpu.memory_space<vmem>>, vector<8x32xf32>
    tpu.vector_store %arg10[%c0_195, %c0_196], %635 {strides = array<i32>} : memref<8x32xf32, #tpu.memory_space<vmem>>, vector<8x32xf32>,
    return
  }
  func.func @transform_0(%arg0: i32, %arg1: memref<4x8xi32, #tpu.memory_space<smem>>) -> (i32, i32) {
    %c0_i32 = arith.constant 0 : i32
    %c0_i32_0 = arith.constant 0 : i32
    %c0_i32_1 = arith.constant 0 : i32
    return %c0_i32, %c0_i32_0 : i32, i32
  }
  func.func @transform_1(%arg0: i32, %arg1: memref<4x8xi32, #tpu.memory_space<smem>>) -> (i32, i32) {
    %c0_i32 = arith.constant 0 : i32
    %c0_i32_0 = arith.constant 0 : i32
    %c0_i32_1 = arith.constant 0 : i32
    return %c0_i32, %c0_i32_0 : i32, i32
  }
  func.func @transform_2(%arg0: i32, %arg1: memref<4x8xi32, #tpu.memory_space<smem>>) -> (i32, i32) {
    %c0_i32 = arith.constant 0 : i32
    %c0_i32_0 = arith.constant 0 : i32
    %c0_i32_1 = arith.constant 0 : i32
    return %c0_i32, %c0_i32_0 : i32, i32
  }
  func.func @transform_3(%arg0: i32, %arg1: memref<4x8xi32, #tpu.memory_space<smem>>) -> (i32, i32) {
    %c0_i32 = arith.constant 0 : i32
    %c0_i32_0 = arith.constant 0 : i32
    %c0_i32_1 = arith.constant 0 : i32
    return %c0_i32, %c0_i32_0 : i32, i32
  }
  func.func @transform_4(%arg0: i32, %arg1: memref<4x8xi32, #tpu.memory_space<smem>>) -> (i32, i32) {
    %c0_i32 = arith.constant 0 : i32
    %c0_i32_0 = arith.constant 0 : i32
    %c0_i32_1 = arith.constant 0 : i32
    return %c0_i32, %c0_i32_0 : i32, i32
  }
  func.func @transform_5(%arg0: i32, %arg1: memref<4x8xi32, #tpu.memory_space<smem>>) -> (i32, i32) {
    %c0_i32 = arith.constant 0 : i32
    %c0_i32_0 = arith.constant 0 : i32
    %c0_i32_1 = arith.constant 0 : i32
    return %c0_i32, %c0_i32_0 : i32, i32
  }
  func.func @transform_6(%arg0: i32, %arg1: memref<4x8xi32, #tpu.memory_space<smem>>) -> (i32, i32, i32) {
    %c0_i32 = arith.constant 0 : i32
    %c0_i32_0 = arith.constant 0 : i32
    %c0_i32_1 = arith.constant 0 : i32
    return %arg0, %c0_i32, %c0_i32_0 : i32, i32, i32
  }
  func.func @transform_7(%arg0: i32, %arg1: memref<4x8xi32, #tpu.memory_space<smem>>) -> (i32, i32) {
    %c0_i32 = arith.constant 0 : i32
    %c0_i32_0 = arith.constant 0 : i32
    %c0_i32_1 = arith.constant 0 : i32
    return %c0_i32, %c0_i32_0 : i32, i32
  }
  func.func @transform_8(%arg0: i32, %arg1: memref<4x8xi32, #tpu.memory_space<smem>>) -> (i32, i32) {
    %c0_i32 = arith.constant 0 : i32
    %c0_i32_0 = arith.constant 0 : i32
    %c0_i32_1 = arith.constant 0 : i32
    return %c0_i32, %c0_i32_0 : i32, i32
  }
}

</mosaic_0001>

<llo_original>
// kernel: tpu_custom_call.1
$region0: #{tpu_custom_call.1}
  #allocation0 [shape = 'u32[]', space=smem, size = 0x4, offset = 0x4, fixed_abs, tag = 'smem constant byte address 0x4 - core index']
  #allocation1 [shape = 'u32[144,128]{1,0:T(1,128)}', space=vmem, size = 0x12000, scoped, tag = 'internal scratch']
  #allocation2 [shape = 's32[1]{0}', space=sflag, size = 0x4, scoped, tag = 'scoped memory for tpu_custom_call.1']
  #allocation3 [shape = 'u8[2048]{0}', space=smem, size = 0x800, scoped, tag = 'prefetched SMEM operand 0']
  %s0 = inlined_call_operand.hbm [shape: s32[4,8], index: 0, kind: input, shape index: {}]
  %s1 = inlined_call_operand.hbm [shape: bf16[128,128], index: 1, kind: input, shape index: {}]
  %s2 = inlined_call_operand.hbm [shape: bf16[32,128], index: 2, kind: input, shape index: {}]
  %s3 = inlined_call_operand.hbm [shape: bf16[32,128], index: 3, kind: input, shape index: {}]
  %s4 = inlined_call_operand.vmem [shape: f32[8,128], index: 4, kind: input, shape index: {}]
  %s5 = inlined_call_operand.vmem [shape: f32[8,32], index: 5, kind: input, shape index: {}]
  %s6 = inlined_call_operand.hbm [shape: f32[8,32], index: 6, kind: input, shape index: {}]
  %s7 = inlined_call_operand.hbm [shape: f32[8,8,128], index: 7, kind: output, shape index: {0}]
  %s8 = inlined_call_operand.hbm [shape: f32[8,32], index: 8, kind: output, shape index: {1}]
  %s9 = inlined_call_operand.hbm [shape: f32[8,32], index: 9, kind: output, shape index: {2}]
  %10 = xla_tuple %s7, %s8, %s9
  %s11 = sld [smem:[#allocation0]]
  $region70: #{tpu_custom_call.1} parent=0
    _
  %s13 = ssub.s32 1, %s11
  %s14 = scalar_select 0, %s13, %s11
  %16 = dma.hbm_to_smem %s0, 64, [#allocation3], [#allocation2]
  %17 = dma.done [#allocation2], 64
  %18 = sfence
  $region1: #{tpu_custom_call.1} parent=0
    #allocation4 [shape = 'u8[32768]{0}', space=vmem, size = 0x8000, scoped, tag = 'input window, operand 1, single buffered']
    #allocation5 [shape = 's32[1]{0}', space=sflag, size = 0x4, scoped, tag = 'scoped memory for tpu_custom_call.1']
    #allocation6 [shape = 's32[1]{0}', space=sflag, size = 0x4, scoped, tag = 'scoped memory for tpu_custom_call.1']
    #allocation7 [shape = 'u8[8192]{0}', space=vmem, size = 0x2000, scoped, tag = 'input window, operand 2, single buffered']
    #allocation8 [shape = 's32[1]{0}', space=sflag, size = 0x4, scoped, tag = 'scoped memory for tpu_custom_call.1']
    #allocation9 [shape = 'u8[8192]{0}', space=vmem, size = 0x2000, scoped, tag = 'input window, operand 3, single buffered']
    #allocation10 [shape = 'u8[4096]{0}', space=vmem, size = 0x1000, scoped, tag = 'input window, operand 6, single buffered']
    #allocation11 [shape = 's32[1]{0}', space=sflag, size = 0x4, scoped, tag = 'scoped memory for tpu_custom_call.1']
    #allocation12 [shape = 'u8[32768]{0}', space=vmem, size = 0x8000, scoped, tag = 'output window, operand 0, single buffered']
    #allocation13 [shape = 'u8[4096]{0}', space=vmem, size = 0x1000, scoped, tag = 'output window, operand 1, single buffered']
    #allocation14 [shape = 's32[1]{0}', space=sflag, size = 0x4, scoped, tag = 'scoped memory for tpu_custom_call.1']
    #allocation15 [shape = 'u8[4096]{0}', space=vmem, size = 0x1000, scoped, tag = 'output window, operand 2, single buffered']
    %19 = vsyncpa [#allocation5], 0
    %20 = vsyncpa [#allocation8], 0
    %21 = vsyncpa [#allocation11], 0
    %22 = vsyncpa [#allocation6], 0
    %23 = vsyncpa [#allocation14], 0
    // Predicated region
    $region2: #{tpu_custom_call.1} parent=1 // pred_check
      _
    $region3: #{tpu_custom_call.1} parent=1 // pred_check_branch
      %25 = sbr.rel (0) target = $region5
    $region4: #{tpu_custom_call.1} parent=1 // pred_region
      %s27 = ssub.s32 1024, 1024
      %28 = vsyncadd [#allocation5], %s27
      %s29 = sshll.u32 [#allocation4], 4
      %s30 = int_to_ptr.vmem [resolvable:$true] %s29
      %35 = dma.hbm_to_vmem [thread:$0]  %s1, 1024, %s30, [#allocation5], 64, 64, 4
    $region5: #{tpu_custom_call.1} parent=1 // pred_fallthru
      _
    // Predicated region
    $region6: #{tpu_custom_call.1} parent=1 // pred_check
      _
    $region7: #{tpu_custom_call.1} parent=1 // pred_check_branch
      %37 = sbr.rel (0) target = $region9
    $region8: #{tpu_custom_call.1} parent=1 // pred_region
      %s39 = ssub.s32 256, 256
      %40 = vsyncadd [#allocation8], %s39
      %s41 = sshll.u32 [#allocation7], 4
      %s42 = int_to_ptr.vmem [resolvable:$true] %s41
      %47 = dma.hbm_to_vmem [thread:$0]  %s2, 256, %s42, [#allocation8], 64, 64, 4
    $region9: #{tpu_custom_call.1} parent=1 // pred_fallthru
      _
    // Predicated region
    $region10: #{tpu_custom_call.1} parent=1 // pred_check
      _
    $region11: #{tpu_custom_call.1} parent=1 // pred_check_branch
      %49 = sbr.rel (0) target = $region13
    $region12: #{tpu_custom_call.1} parent=1 // pred_region
      %s51 = ssub.s32 256, 256
      %52 = vsyncadd [#allocation8], %s51
      %s53 = sshll.u32 [#allocation9], 4
      %s54 = int_to_ptr.vmem [resolvable:$true] %s53
      %59 = dma.hbm_to_vmem [thread:$0]  %s3, 256, %s54, [#allocation8], 64, 64, 4
    $region13: #{tpu_custom_call.1} parent=1 // pred_fallthru
      _
    // Predicated region
    $region14: #{tpu_custom_call.1} parent=1 // pred_check
      _
    $region15: #{tpu_custom_call.1} parent=1 // pred_check_branch
      %61 = sbr.rel (0) target = $region17
    $region16: #{tpu_custom_call.1} parent=1 // pred_region
      _
    $region17: #{tpu_custom_call.1} parent=1 // pred_fallthru
      _
    // Predicated region
    $region18: #{tpu_custom_call.1} parent=1 // pred_check
      _
    $region19: #{tpu_custom_call.1} parent=1 // pred_check_branch
      %63 = sbr.rel (0) target = $region21
    $region20: #{tpu_custom_call.1} parent=1 // pred_region
      _
    $region21: #{tpu_custom_call.1} parent=1 // pred_fallthru
      _
    // Predicated region
    $region22: #{tpu_custom_call.1} parent=1 // pred_check
      _
    $region23: #{tpu_custom_call.1} parent=1 // pred_check_branch
      %65 = sbr.rel (0) target = $region25
    $region24: #{tpu_custom_call.1} parent=1 // pred_region
      %s67 = ssub.s32 128, 128
      %68 = vsyncadd [#allocation11], %s67
      %s70 = sshll.u32 [#allocation10], 4
      %s71 = int_to_ptr.vmem [resolvable:$true] %s70
      %73 = dma.hbm_to_vmem [thread:$0]  %s6, 128, %s71, [#allocation11]
    $region25: #{tpu_custom_call.1} parent=1 // pred_fallthru
      _
    // Predicated region
    $region26: #{tpu_custom_call.1} parent=1 // pred_check
      _
    $region27: #{tpu_custom_call.1} parent=1 // pred_check_branch
      %75 = sbr.rel (0) target = $region29
    $region28: #{tpu_custom_call.1} parent=1 // pred_region
      %76 = dma.done [#allocation5], 1024
    $region29: #{tpu_custom_call.1} parent=1 // pred_fallthru
      _
    // Predicated region
    $region30: #{tpu_custom_call.1} parent=1 // pred_check
      _
    $region31: #{tpu_custom_call.1} parent=1 // pred_check_branch
      %78 = sbr.rel (0) target = $region33
    $region32: #{tpu_custom_call.1} parent=1 // pred_region
      %79 = dma.done [#allocation8], 256
    $region33: #{tpu_custom_call.1} parent=1 // pred_fallthru
      _
    // Predicated region
    $region34: #{tpu_custom_call.1} parent=1 // pred_check
      _
    $region35: #{tpu_custom_call.1} parent=1 // pred_check_branch
      %81 = sbr.rel (0) target = $region37
    $region36: #{tpu_custom_call.1} parent=1 // pred_region
      %82 = dma.done [#allocation8], 256
    $region37: #{tpu_custom_call.1} parent=1 // pred_fallthru
      _
    // Predicated region
    $region38: #{tpu_custom_call.1} parent=1 // pred_check
      _
    $region39: #{tpu_custom_call.1} parent=1 // pred_check_branch
      %84 = sbr.rel (0) target = $region41
    $region40: #{tpu_custom_call.1} parent=1 // pred_region
      %85 = dma.done [#allocation11], 128
    $region41: #{tpu_custom_call.1} parent=1 // pred_fallthru
      _
    %p87 = scmp.eq.s32.totalorder 0, 0
    // Predicated region
    $region42: #{tpu_custom_call.1} parent=1 // pred_check
      %p88 = pneg %p87
    $region43: #{tpu_custom_call.1} parent=1 // pred_check_branch
      %90 = sbr.rel (%p88) target = $region45
    $region44: #{tpu_custom_call.1} parent=1 // pred_region
      %v91 = vld [vmem:[%s5] sm:$0xff]
      %vm92 = vcmask 261120
      %93 = vst.msk [vmem:[#allocation13] sm:$0xff] %vm92, %v91
      %v94 = vld [vmem:[#allocation10] sm:$0xff]
      %95 = vst.msk [vmem:[#allocation15] sm:$0xff] %vm92, %v94
    $region45: #{tpu_custom_call.1} parent=1 // pred_fallthru
      _
    %v96 = vld [vmem:[#allocation4] sm:$0xf]
    %v97 = vld [vmem:[#allocation4 + $0x4] sm:$0xf]
    %v98 = vld [vmem:[#allocation4 + $0x8] sm:$0xf]
    %v99 = vld [vmem:[#allocation4 + $0xc] sm:$0xf]
    %v100 = vld [vmem:[#allocation4 + $0x10] sm:$0xf]
    %v101 = vld [vmem:[#allocation4 + $0x14] sm:$0xf]
    %v102 = vld [vmem:[#allocation4 + $0x18] sm:$0xf]
    %v103 = vld [vmem:[#allocation4 + $0x1c] sm:$0xf]
    %v104 = vld [vmem:[#allocation4 + $0x20] sm:$0xf]
    %v105 = vld [vmem:[#allocation4 + $0x24] sm:$0xf]
    %v106 = vld [vmem:[#allocation4 + $0x28] sm:$0xf]
    %v107 = vld [vmem:[#allocation4 + $0x2c] sm:$0xf]
    %v108 = vld [vmem:[#allocation4 + $0x30] sm:$0xf]
    %v109 = vld [vmem:[#allocation4 + $0x34] sm:$0xf]
    %v110 = vld [vmem:[#allocation4 + $0x38] sm:$0xf]
    %v111 = vld [vmem:[#allocation4 + $0x3c] sm:$0xf]
    %v112 = vld [vmem:[#allocation7] sm:$0xf]
    %v113 = vld [vmem:[#allocation7 + $0x4] sm:$0xf]
    %v114 = vld [vmem:[#allocation7 + $0x8] sm:$0xf]
    %v115 = vld [vmem:[#allocation7 + $0xc] sm:$0xf]
    %v116 = vld [vmem:[#allocation9] sm:$0xf]
    %v117 = vld [vmem:[#allocation9 + $0x4] sm:$0xf]
    %v118 = vld [vmem:[#allocation9 + $0x8] sm:$0xf]
    %v119 = vld [vmem:[#allocation9 + $0xc] sm:$0xf]
    %v120 = vld [vmem:[%s4] sm:$0xff]
    %v121 = vlaneseq
    %v122 = vshrl.u32 %v121, 7
    %v123 = vlaneseq
    %v124 = vand.u32 %v123, 127
    %v125 = vld [vmem:[#allocation13] sm:$0xff]
    %v126 = vld [vmem:[#allocation15] sm:$0xff]
    %s127 = smul.u32 0, 8
    %vm128 = vcmp.eq.s32.totalorder %v122, 0
    %s129 = sld [smem:[#allocation3 + %s127]]
    %v130 = vstv %s129
    %vm131 = vcmp.eq.s32.totalorder %v124, %v130
    %vm132 = vmand %vm128, %vm131
    %v133 = vsel %vm132, 1.0, 0.0
    %vm134 = vcmp.eq.s32.totalorder %v122, 1
    %s135 = sshra.s32 %s127, 7
    %s136 = sand.u32 %s127, 127
    %s137 = sadd.s32 %s135, 1
    %s138 = smul.u32 %s137, 128
    %s139 = sshra.s32 %s127, 7
    %s140 = sand.u32 %s127, 127
    %s141 = sadd.s32 %s138, %s140
    %s142 = sld [smem:[#allocation3 + %s141]]
    %v143 = vstv %s142
    %vm144 = vcmp.eq.s32.totalorder %v124, %v143
    %vm145 = vmand %vm134, %vm144
    %v146 = vsel %vm145, 1.0, %v133
    %vm147 = vcmp.eq.s32.totalorder %v122, 2
    %s148 = sadd.s32 %s135, 2
    %s149 = smul.u32 %s148, 128
    %s150 = sadd.s32 %s149, %s140
    %s151 = sld [smem:[#allocation3 + %s150]]
    %v152 = vstv %s151
    %vm153 = vcmp.eq.s32.totalorder %v124, %v152
    %vm154 = vmand %vm147, %vm153
    %v155 = vsel %vm154, 1.0, %v146
    %vm156 = vcmp.eq.s32.totalorder %v122, 3
    %s157 = sadd.s32 %s135, 3
    %s158 = smul.u32 %s157, 128
    %s159 = sadd.s32 %s158, %s140
    %s160 = sld [smem:[#allocation3 + %s159]]
    %v161 = vstv %s160
    %vm162 = vcmp.eq.s32.totalorder %v124, %v161
    %vm163 = vmand %vm156, %vm162
    %v164 = vsel %vm163, 1.0, %v155
    %v165 = vpack.c.bf16 %v164, %v164
    %v166 = vpack.c.bf16 %v125, %v125
    %v171 = vunpack.c.l.b16 %v112
    %v172 = vunpack.c.l.b16 %v113
    %v173 = vunpack.c.l.b16 %v114
    %v174 = vunpack.c.l.b16 %v115
    %v175 = vpack.c.b16 %v172, %v171
    %v176 = vpack.c.b16 %v174, %v173
    %vm179 = vcmask 261120
    %v181 = vsel %vm179, %v166, 0
    %183 = vmatprep.subr.bf16.mxu0 0
    %184 = vmatpush1.bf16.msra.mxu0 %v175
    %185 = vmatprep.subr.bf16.mxu0 0
    %186 = vmatpush1.bf16.msra.mxu0 %v176
    %187 = vmatprep.subr.bf16.mxu0 0
    %188 = vmatpush1.bf16.msra.mxu0 0
    %189 = vmatprep.subr.bf16.mxu0 0
    %190 = vmatpush1.bf16.msra.mxu0 0
    %191 = vmatprep.subr.bf16.mxu0 0
    %192 = vmatpush1.bf16.msra.mxu0 0
    %193 = vmatprep.subr.bf16.mxu0 0
    %194 = vmatpush1.bf16.msra.mxu0 0
    %195 = vmatprep.subr.bf16.mxu0 0
    %196 = vmatpush1.bf16.msra.mxu0 0
    %197 = vmatprep.subr.bf16.mxu0 0
    %198 = vmatpush1.bf16.msra.mxu0 0
    %199 = vmatprep.subr.bf16.mxu0 0
    %200 = vmatpush1.bf16.msra.mxu0 0
    %201 = vmatprep.subr.bf16.mxu0 0
    %202 = vmatpush1.bf16.msra.mxu0 0
    %203 = vmatprep.subr.bf16.mxu0 0
    %204 = vmatpush1.bf16.msra.mxu0 0
    %205 = vmatprep.subr.bf16.mxu0 0
    %206 = vmatpush1.bf16.msra.mxu0 0
    %207 = vmatprep.subr.bf16.mxu0 0
    %208 = vmatpush1.bf16.msra.mxu0 0
    %209 = vmatprep.subr.bf16.mxu0 0
    %210 = vmatpush1.bf16.msra.mxu0 0
    %211 = vmatprep.subr.bf16.mxu0 0
    %212 = vmatpush1.bf16.msra.mxu0 0
    %213 = vmatprep.subr.bf16.mxu0 0
    %214 = vmatpush1.bf16.msra.mxu0 0
    %215 = vmatprep.mubr.bf16.mxu0 0
    %216 = vmatmul.mubr.bf16.gmra.mrb[0].mxu0 %v181
    %v217 = vpop.f32.mrb[0].mxu0
    %v218 = vadd.f32 0.0, %v217
    %v219 = vpop.f32.mrb[0].mxu0
    %v220 = vpop.f32.mrb[0].mxu0
    %v221 = vpop.f32.mrb[0].mxu0
    %222 = vdwg.mxu0
    %v239 = vunpack.c.l.b16 %v96
    %v240 = vunpack.c.l.b16 %v97
    %v241 = vunpack.c.l.b16 %v98
    %v242 = vunpack.c.l.b16 %v99
    %v243 = vunpack.c.l.b16 %v100
    %v244 = vunpack.c.l.b16 %v101
    %v245 = vunpack.c.l.b16 %v102
    %v246 = vunpack.c.l.b16 %v103
    %v247 = vunpack.c.l.b16 %v104
    %v248 = vunpack.c.l.b16 %v105
    %v249 = vunpack.c.l.b16 %v106
    %v250 = vunpack.c.l.b16 %v107
    %v251 = vunpack.c.l.b16 %v108
    %v252 = vunpack.c.l.b16 %v109
    %v253 = vunpack.c.l.b16 %v110
    %v254 = vunpack.c.l.b16 %v111
    %v255 = vpack.c.b16 %v240, %v239
    %v256 = vpack.c.b16 %v242, %v241
    %v257 = vpack.c.b16 %v244, %v243
    %v258 = vpack.c.b16 %v246, %v245
    %v259 = vpack.c.b16 %v248, %v247
    %v260 = vpack.c.b16 %v250, %v249
    %v261 = vpack.c.b16 %v252, %v251
    %v262 = vpack.c.b16 %v254, %v253
    %271 = vmatprep.subr.bf16.mxu0 0
    %272 = vmatpush1.bf16.msra.mxu0 %v255
    %273 = vmatprep.subr.bf16.mxu0 0
    %274 = vmatpush1.bf16.msra.mxu0 %v256
    %275 = vmatprep.subr.bf16.mxu0 0
    %276 = vmatpush1.bf16.msra.mxu0 %v257
    %277 = vmatprep.subr.bf16.mxu0 0
    %278 = vmatpush1.bf16.msra.mxu0 %v258
    %279 = vmatprep.subr.bf16.mxu0 0
    %280 = vmatpush1.bf16.msra.mxu0 %v259
    %281 = vmatprep.subr.bf16.mxu0 0
    %282 = vmatpush1.bf16.msra.mxu0 %v260
    %283 = vmatprep.subr.bf16.mxu0 0
    %284 = vmatpush1.bf16.msra.mxu0 %v261
    %285 = vmatprep.subr.bf16.mxu0 0
    %286 = vmatpush1.bf16.msra.mxu0 %v262
    %287 = vmatprep.subr.bf16.mxu0 0
    %288 = vmatpush1.bf16.msra.mxu0 0
    %289 = vmatprep.subr.bf16.mxu0 0
    %290 = vmatpush1.bf16.msra.mxu0 0
    %291 = vmatprep.subr.bf16.mxu0 0
    %292 = vmatpush1.bf16.msra.mxu0 0
    %293 = vmatprep.subr.bf16.mxu0 0
    %294 = vmatpush1.bf16.msra.mxu0 0
    %295 = vmatprep.subr.bf16.mxu0 0
    %296 = vmatpush1.bf16.msra.mxu0 0
    %297 = vmatprep.subr.bf16.mxu0 0
    %298 = vmatpush1.bf16.msra.mxu0 0
    %299 = vmatprep.subr.bf16.mxu0 0
    %300 = vmatpush1.bf16.msra.mxu0 0
    %301 = vmatprep.subr.bf16.mxu0 0
    %302 = vmatpush1.bf16.msra.mxu0 0
    %303 = vmatprep.mubr.bf16.mxu0 0
    %304 = vmatmul.mubr.bf16.gmra.mrb[0].mxu0 %v165
    %v305 = vpop.f32.mrb[0].mxu0
    %v306 = vadd.f32 %v218, %v305
    %v307 = vpop.f32.mrb[0].mxu0
    %v308 = vpop.f32.mrb[0].mxu0
    %v309 = vpop.f32.mrb[0].mxu0
    %310 = vdwg.mxu0
    %v311 = vxor.u32 %v306, 2147483648
    %v312 = vmul.f32 %v311, 1.442695
    %v313 = vpow.pop %v312
    %v314 = vadd.f32 %v313, 1.0
    %v315 = vrcp.pop %v314
    %v316 = vmul.f32 1.0, %v315
    %v317 = vtanh.pop %v306
    %319 = vrot.lane.b32.xlu0 %v126, 32
    %v320 = vpop.permute.xlu0 %319
    %v322 = vmul.f32 %v316, %v320
    %324 = vrot.lane.b32.xlu0 %v317, 64
    %v325 = vpop.permute.xlu0 %324
    %v327 = vmul.f32 %v316, %v325
    %329 = vrot.lane.b32.xlu0 %v327, 32
    %v330 = vpop.permute.xlu0 %329
    %v332 = vadd.f32 %v322, %v330
    %v333 = vtanh.pop %v332
    %335 = vrot.lane.b32.xlu0 %v333, 64
    %v336 = vpop.permute.xlu0 %335
    %v338 = vmul.f32 %v316, %v336
    %p339 = scmp.lt.s32.totalorder %s127, 8
    %s340 = scalar_select %p339, 1, 0
    %v341 = vstv %s340
    %vm342 = vcmp.eq.s32.totalorder %v341, 1
    %344 = vrot.lane.b32.xlu0 %v125, 96
    %v345 = vpop.permute.xlu0 %344
    %v347 = vsel %vm342, %v338, %v345
    %v348 = vsel %vm342, %v332, %v320
    %v349 = vpack.c.bf16 %v347, %v347
    %351 = vrot.lane.b32.xlu0 %v349, 32
    %v352 = vpop.permute.xlu0 %351
    %v357 = vunpack.c.l.b16 %v116
    %v358 = vunpack.c.l.b16 %v117
    %v359 = vunpack.c.l.b16 %v118
    %v360 = vunpack.c.l.b16 %v119
    %v361 = vpack.c.b16 %v358, %v357
    %v362 = vpack.c.b16 %v360, %v359
    %v366 = vsel %vm179, %v352, 0
    %368 = vmatprep.subr.bf16.mxu0 0
    %369 = vmatpush1.bf16.msra.mxu0 %v361
    %370 = vmatprep.subr.bf16.mxu0 0
    %371 = vmatpush1.bf16.msra.mxu0 %v362
    %372 = vmatprep.subr.bf16.mxu0 0
    %373 = vmatpush1.bf16.msra.mxu0 0
    %374 = vmatprep.subr.bf16.mxu0 0
    %375 = vmatpush1.bf16.msra.mxu0 0
    %376 = vmatprep.subr.bf16.mxu0 0
    %377 = vmatpush1.bf16.msra.mxu0 0
    %378 = vmatprep.subr.bf16.mxu0 0
    %379 = vmatpush1.bf16.msra.mxu0 0
    %380 = vmatprep.subr.bf16.mxu0 0
    %381 = vmatpush1.bf16.msra.mxu0 0
    %382 = vmatprep.subr.bf16.mxu0 0
    %383 = vmatpush1.bf16.msra.mxu0 0
    %384 = vmatprep.subr.bf16.mxu0 0
    %385 = vmatpush1.bf16.msra.mxu0 0
    %386 = vmatprep.subr.bf16.mxu0 0
    %387 = vmatpush1.bf16.msra.mxu0 0
    %388 = vmatprep.subr.bf16.mxu0 0
    %389 = vmatpush1.bf16.msra.mxu0 0
    %390 = vmatprep.subr.bf16.mxu0 0
    %391 = vmatpush1.bf16.msra.mxu0 0
    %392 = vmatprep.subr.bf16.mxu0 0
    %393 = vmatpush1.bf16.msra.mxu0 0
    %394 = vmatprep.subr.bf16.mxu0 0
    %395 = vmatpush1.bf16.msra.mxu0 0
    %396 = vmatprep.subr.bf16.mxu0 0
    %397 = vmatpush1.bf16.msra.mxu0 0
    %398 = vmatprep.subr.bf16.mxu0 0
    %399 = vmatpush1.bf16.msra.mxu0 0
    %400 = vmatprep.mubr.bf16.mxu0 0
    %401 = vmatmul.mubr.bf16.gmra.mrb[0].mxu0 %v366
    %v402 = vpop.f32.mrb[0].mxu0
    %v403 = vadd.f32 %v120, %v402
    %v404 = vpop.f32.mrb[0].mxu0
    %v405 = vpop.f32.mrb[0].mxu0
    %v406 = vpop.f32.mrb[0].mxu0
    %407 = vdwg.mxu0
    %408 = vst [vmem:[#allocation12] sm:$0xff] %v403
    %s409 = sadd.s32 %s127, 1
    %s410 = sld [smem:[#allocation3 + %s409]]
    %v411 = vstv %s410
    %vm412 = vcmp.eq.s32.totalorder %v124, %v411
    %vm413 = vmand %vm128, %vm412
    %v414 = vsel %vm413, 1.0, 0.0
    %s415 = sshra.s32 %s409, 7
    %s416 = sand.u32 %s409, 127
    %s417 = sadd.s32 %s415, 1
    %s418 = smul.u32 %s417, 128
    %s419 = sshra.s32 %s409, 7
    %s420 = sand.u32 %s409, 127
    %s421 = sadd.s32 %s418, %s420
    %s422 = sld [smem:[#allocation3 + %s421]]
    %v423 = vstv %s422
    %vm424 = vcmp.eq.s32.totalorder %v124, %v423
    %vm425 = vmand %vm134, %vm424
    %v426 = vsel %vm425, 1.0, %v414
    %s427 = sadd.s32 %s415, 2
    %s428 = smul.u32 %s427, 128
    %s429 = sadd.s32 %s428, %s420
    %s430 = sld [smem:[#allocation3 + %s429]]
    %v431 = vstv %s430
    %vm432 = vcmp.eq.s32.totalorder %v124, %v431
    %vm433 = vmand %vm147, %vm432
    %v434 = vsel %vm433, 1.0, %v426
    %s435 = sadd.s32 %s415, 3
    %s436 = smul.u32 %s435, 128
    %s437 = sadd.s32 %s436, %s420
    %s438 = sld [smem:[#allocation3 + %s437]]
    %v439 = vstv %s438
    %vm440 = vcmp.eq.s32.totalorder %v124, %v439
    %vm441 = vmand %vm156, %vm440
    %v442 = vsel %vm441, 1.0, %v434
    %v443 = vpack.c.bf16 %v442, %v442
    %444 = vmatprep.subr.bf16.mxu0 0
    %445 = vmatpush1.bf16.msra.mxu0 %v175
    %446 = vmatprep.subr.bf16.mxu0 0
    %447 = vmatpush1.bf16.msra.mxu0 %v176
    %448 = vmatprep.subr.bf16.mxu0 0
    %449 = vmatpush1.bf16.msra.mxu0 0
    %450 = vmatprep.subr.bf16.mxu0 0
    %451 = vmatpush1.bf16.msra.mxu0 0
    %452 = vmatprep.subr.bf16.mxu0 0
    %453 = vmatpush1.bf16.msra.mxu0 0
    %454 = vmatprep.subr.bf16.mxu0 0
    %455 = vmatpush1.bf16.msra.mxu0 0
    %456 = vmatprep.subr.bf16.mxu0 0
    %457 = vmatpush1.bf16.msra.mxu0 0
    %458 = vmatprep.subr.bf16.mxu0 0
    %459 = vmatpush1.bf16.msra.mxu0 0
    %460 = vmatprep.subr.bf16.mxu0 0
    %461 = vmatpush1.bf16.msra.mxu0 0
    %462 = vmatprep.subr.bf16.mxu0 0
    %463 = vmatpush1.bf16.msra.mxu0 0
    %464 = vmatprep.subr.bf16.mxu0 0
    %465 = vmatpush1.bf16.msra.mxu0 0
    %466 = vmatprep.subr.bf16.mxu0 0
    %467 = vmatpush1.bf16.msra.mxu0 0
    %468 = vmatprep.subr.bf16.mxu0 0
    %469 = vmatpush1.bf16.msra.mxu0 0
    %470 = vmatprep.subr.bf16.mxu0 0
    %471 = vmatpush1.bf16.msra.mxu0 0
    %472 = vmatprep.subr.bf16.mxu0 0
    %473 = vmatpush1.bf16.msra.mxu0 0
    %474 = vmatprep.subr.bf16.mxu0 0
    %475 = vmatpush1.bf16.msra.mxu0 0
    %476 = vmatprep.mubr.bf16.mxu0 0
    %477 = vmatmul.mubr.bf16.gmra.mrb[0].mxu0 %v366
    %v478 = vpop.f32.mrb[0].mxu0
    %v479 = vadd.f32 0.0, %v478
    %v480 = vpop.f32.mrb[0].mxu0
    %v481 = vpop.f32.mrb[0].mxu0
    %v482 = vpop.f32.mrb[0].mxu0
    %483 = vdwg.mxu0
    %484 = vmatprep.subr.bf16.mxu0 0
    %485 = vmatpush1.bf16.msra.mxu0 %v255
    %486 = vmatprep.subr.bf16.mxu0 0
    %487 = vmatpush1.bf16.msra.mxu0 %v256
    %488 = vmatprep.subr.bf16.mxu0 0
    %489 = vmatpush1.bf16.msra.mxu0 %v257
    %490 = vmatprep.subr.bf16.mxu0 0
    %491 = vmatpush1.bf16.msra.mxu0 %v258
    %492 = vmatprep.subr.bf16.mxu0 0
    %493 = vmatpush1.bf16.msra.mxu0 %v259
    %494 = vmatprep.subr.bf16.mxu0 0
    %495 = vmatpush1.bf16.msra.mxu0 %v260
    %496 = vmatprep.subr.bf16.mxu0 0
    %497 = vmatpush1.bf16.msra.mxu0 %v261
    %498 = vmatprep.subr.bf16.mxu0 0
    %499 = vmatpush1.bf16.msra.mxu0 %v262
    %500 = vmatprep.subr.bf16.mxu0 0
    %501 = vmatpush1.bf16.msra.mxu0 0
    %502 = vmatprep.subr.bf16.mxu0 0
    %503 = vmatpush1.bf16.msra.mxu0 0
    %504 = vmatprep.subr.bf16.mxu0 0
    %505 = vmatpush1.bf16.msra.mxu0 0
    %506 = vmatprep.subr.bf16.mxu0 0
    %507 = vmatpush1.bf16.msra.mxu0 0
    %508 = vmatprep.subr.bf16.mxu0 0
    %509 = vmatpush1.bf16.msra.mxu0 0
    %510 = vmatprep.subr.bf16.mxu0 0
    %511 = vmatpush1.bf16.msra.mxu0 0
    %512 = vmatprep.subr.bf16.mxu0 0
    %513 = vmatpush1.bf16.msra.mxu0 0
    %514 = vmatprep.subr.bf16.mxu0 0
    %515 = vmatpush1.bf16.msra.mxu0 0
    %516 = vmatprep.mubr.bf16.mxu0 0
    %517 = vmatmul.mubr.bf16.gmra.mrb[0].mxu0 %v443
    %v518 = vpop.f32.mrb[0].mxu0
    %v519 = vadd.f32 %v479, %v518
    %v520 = vpop.f32.mrb[0].mxu0
    %v521 = vpop.f32.mrb[0].mxu0
    %v522 = vpop.f32.mrb[0].mxu0
    %523 = vdwg.mxu0
    %v524 = vxor.u32 %v519, 2147483648
    %v525 = vmul.f32 %v524, 1.442695
    %v526 = vpow.pop %v525
    %v527 = vadd.f32 %v526, 1.0
    %v528 = vrcp.pop %v527
    %v529 = vmul.f32 1.0, %v528
    %v530 = vtanh.pop %v519
    %v531 = vmul.f32 %v529, %v348
    %533 = vrot.lane.b32.xlu0 %v530, 64
    %v534 = vpop.permute.xlu0 %533
    %v536 = vmul.f32 %v529, %v534
    %538 = vrot.lane.b32.xlu0 %v536, 32
    %v539 = vpop.permute.xlu0 %538
    %v541 = vadd.f32 %v531, %v539
    %v542 = vtanh.pop %v541
    %544 = vrot.lane.b32.xlu0 %v542, 64
    %v545 = vpop.permute.xlu0 %544
    %v547 = vmul.f32 %v529, %v545
    %p548 = scmp.lt.s32.totalorder %s409, 8
    %s549 = scalar_select %p548, 1, 0
    %v550 = vstv %s549
    %vm551 = vcmp.eq.s32.totalorder %v550, 1
    %v552 = vsel %vm551, %v547, %v347
    %v553 = vsel %vm551, %v541, %v348
    %v554 = vpack.c.bf16 %v552, %v552
    %556 = vrot.lane.b32.xlu0 %v554, 32
    %v557 = vpop.permute.xlu0 %556
    %v559 = vsel %vm179, %v557, 0
    %561 = vmatprep.subr.bf16.mxu0 0
    %562 = vmatpush1.bf16.msra.mxu0 %v361
    %563 = vmatprep.subr.bf16.mxu0 0
    %564 = vmatpush1.bf16.msra.mxu0 %v362
    %565 = vmatprep.subr.bf16.mxu0 0
    %566 = vmatpush1.bf16.msra.mxu0 0
    %567 = vmatprep.subr.bf16.mxu0 0
    %568 = vmatpush1.bf16.msra.mxu0 0
    %569 = vmatprep.subr.bf16.mxu0 0
    %570 = vmatpush1.bf16.msra.mxu0 0
    %571 = vmatprep.subr.bf16.mxu0 0
    %572 = vmatpush1.bf16.msra.mxu0 0
    %573 = vmatprep.subr.bf16.mxu0 0
    %574 = vmatpush1.bf16.msra.mxu0 0
    %575 = vmatprep.subr.bf16.mxu0 0
    %576 = vmatpush1.bf16.msra.mxu0 0
    %577 = vmatprep.subr.bf16.mxu0 0
    %578 = vmatpush1.bf16.msra.mxu0 0
    %579 = vmatprep.subr.bf16.mxu0 0
    %580 = vmatpush1.bf16.msra.mxu0 0
    %581 = vmatprep.subr.bf16.mxu0 0
    %582 = vmatpush1.bf16.msra.mxu0 0
    %583 = vmatprep.subr.bf16.mxu0 0
    %584 = vmatpush1.bf16.msra.mxu0 0
    %585 = vmatprep.subr.bf16.mxu0 0
    %586 = vmatpush1.bf16.msra.mxu0 0
    %587 = vmatprep.subr.bf16.mxu0 0
    %588 = vmatpush1.bf16.msra.mxu0 0
    %589 = vmatprep.subr.bf16.mxu0 0
    %590 = vmatpush1.bf16.msra.mxu0 0
    %591 = vmatprep.subr.bf16.mxu0 0
    %592 = vmatpush1.bf16.msra.mxu0 0
    %593 = vmatprep.mubr.bf16.mxu0 0
    %594 = vmatmul.mubr.bf16.gmra.mrb[0].mxu0 %v559
    %v595 = vpop.f32.mrb[0].mxu0
    %v596 = vadd.f32 %v120, %v595
    %v597 = vpop.f32.mrb[0].mxu0
    %v598 = vpop.f32.mrb[0].mxu0
    %v599 = vpop.f32.mrb[0].mxu0
    %600 = vdwg.mxu0
    %s601 = scalar_lea.vmem [#allocation12], 8
    %602 = vst [vmem:[%s601] sm:$0xff] %v596
    %s603 = sadd.s32 %s127, 2
    %s604 = sld [smem:[#allocation3 + %s603]]
    %v605 = vstv %s604
    %vm606 = vcmp.eq.s32.totalorder %v124, %v605
    %vm607 = vmand %vm128, %vm606
    %v608 = vsel %vm607, 1.0, 0.0
    %s609 = sshra.s32 %s603, 7
    %s610 = sand.u32 %s603, 127
    %s611 = sadd.s32 %s609, 1
    %s612 = smul.u32 %s611, 128
    %s613 = sshra.s32 %s603, 7
    %s614 = sand.u32 %s603, 127
    %s615 = sadd.s32 %s612, %s614
    %s616 = sld [smem:[#allocation3 + %s615]]
    %v617 = vstv %s616
    %vm618 = vcmp.eq.s32.totalorder %v124, %v617
    %vm619 = vmand %vm134, %vm618
    %v620 = vsel %vm619, 1.0, %v608
    %s621 = sadd.s32 %s609, 2
    %s622 = smul.u32 %s621, 128
    %s623 = sadd.s32 %s622, %s614
    %s624 = sld [smem:[#allocation3 + %s623]]
    %v625 = vstv %s624
    %vm626 = vcmp.eq.s32.totalorder %v124, %v625
    %vm627 = vmand %vm147, %vm626
    %v628 = vsel %vm627, 1.0, %v620
    %s629 = sadd.s32 %s609, 3
    %s630 = smul.u32 %s629, 128
    %s631 = sadd.s32 %s630, %s614
    %s632 = sld [smem:[#allocation3 + %s631]]
    %v633 = vstv %s632
    %vm634 = vcmp.eq.s32.totalorder %v124, %v633
    %vm635 = vmand %vm156, %vm634
    %v636 = vsel %vm635, 1.0, %v628
    %v637 = vpack.c.bf16 %v636, %v636
    %638 = vmatprep.subr.bf16.mxu0 0
    %639 = vmatpush1.bf16.msra.mxu0 %v175
    %640 = vmatprep.subr.bf16.mxu0 0
    %641 = vmatpush1.bf16.msra.mxu0 %v176
    %642 = vmatprep.subr.bf16.mxu0 0
    %643 = vmatpush1.bf16.msra.mxu0 0
    %644 = vmatprep.subr.bf16.mxu0 0
    %645 = vmatpush1.bf16.msra.mxu0 0
    %646 = vmatprep.subr.bf16.mxu0 0
    %647 = vmatpush1.bf16.msra.mxu0 0
    %648 = vmatprep.subr.bf16.mxu0 0
    %649 = vmatpush1.bf16.msra.mxu0 0
    %650 = vmatprep.subr.bf16.mxu0 0
    %651 = vmatpush1.bf16.msra.mxu0 0
    %652 = vmatprep.subr.bf16.mxu0 0
    %653 = vmatpush1.bf16.msra.mxu0 0
    %654 = vmatprep.subr.bf16.mxu0 0
    %655 = vmatpush1.bf16.msra.mxu0 0
    %656 = vmatprep.subr.bf16.mxu0 0
    %657 = vmatpush1.bf16.msra.mxu0 0
    %658 = vmatprep.subr.bf16.mxu0 0
    %659 = vmatpush1.bf16.msra.mxu0 0
    %660 = vmatprep.subr.bf16.mxu0 0
    %661 = vmatpush1.bf16.msra.mxu0 0
    %662 = vmatprep.subr.bf16.mxu0 0
    %663 = vmatpush1.bf16.msra.mxu0 0
    %664 = vmatprep.subr.bf16.mxu0 0
    %665 = vmatpush1.bf16.msra.mxu0 0
    %666 = vmatprep.subr.bf16.mxu0 0
    %667 = vmatpush1.bf16.msra.mxu0 0
    %668 = vmatprep.subr.bf16.mxu0 0
    %669 = vmatpush1.bf16.msra.mxu0 0
    %670 = vmatprep.mubr.bf16.mxu0 0
    %671 = vmatmul.mubr.bf16.gmra.mrb[0].mxu0 %v559
    %v672 = vpop.f32.mrb[0].mxu0
    %v673 = vadd.f32 0.0, %v672
    %v674 = vpop.f32.mrb[0].mxu0
    %v675 = vpop.f32.mrb[0].mxu0
    %v676 = vpop.f32.mrb[0].mxu0
    %677 = vdwg.mxu0
    %678 = vmatprep.subr.bf16.mxu0 0
    %679 = vmatpush1.bf16.msra.mxu0 %v255
    %680 = vmatprep.subr.bf16.mxu0 0
    %681 = vmatpush1.bf16.msra.mxu0 %v256
    %682 = vmatprep.subr.bf16.mxu0 0
    %683 = vmatpush1.bf16.msra.mxu0 %v257
    %684 = vmatprep.subr.bf16.mxu0 0
    %685 = vmatpush1.bf16.msra.mxu0 %v258
    %686 = vmatprep.subr.bf16.mxu0 0
    %687 = vmatpush1.bf16.msra.mxu0 %v259
    %688 = vmatprep.subr.bf16.mxu0 0
    %689 = vmatpush1.bf16.msra.mxu0 %v260
    %690 = vmatprep.subr.bf16.mxu0 0
    %691 = vmatpush1.bf16.msra.mxu0 %v261
    %692 = vmatprep.subr.bf16.mxu0 0
    %693 = vmatpush1.bf16.msra.mxu0 %v262
    %694 = vmatprep.subr.bf16.mxu0 0
    %695 = vmatpush1.bf16.msra.mxu0 0
    %696 = vmatprep.subr.bf16.mxu0 0
    %697 = vmatpush1.bf16.msra.mxu0 0
    %698 = vmatprep.subr.bf16.mxu0 0
    %699 = vmatpush1.bf16.msra.mxu0 0
    %700 = vmatprep.subr.bf16.mxu0 0
    %701 = vmatpush1.bf16.msra.mxu0 0
    %702 = vmatprep.subr.bf16.mxu0 0
    %703 = vmatpush1.bf16.msra.mxu0 0
    %704 = vmatprep.subr.bf16.mxu0 0
    %705 = vmatpush1.bf16.msra.mxu0 0
    %706 = vmatprep.subr.bf16.mxu0 0
    %707 = vmatpush1.bf16.msra.mxu0 0
    %708 = vmatprep.subr.bf16.mxu0 0
    %709 = vmatpush1.bf16.msra.mxu0 0
    %710 = vmatprep.mubr.bf16.mxu0 0
    %711 = vmatmul.mubr.bf16.gmra.mrb[0].mxu0 %v637
    %v712 = vpop.f32.mrb[0].mxu0
    %v713 = vadd.f32 %v673, %v712
    %v714 = vpop.f32.mrb[0].mxu0
    %v715 = vpop.f32.mrb[0].mxu0
    %v716 = vpop.f32.mrb[0].mxu0
    %717 = vdwg.mxu0
    %v718 = vxor.u32 %v713, 2147483648
    %v719 = vmul.f32 %v718, 1.442695
    %v720 = vpow.pop %v719
    %v721 = vadd.f32 %v720, 1.0
    %v722 = vrcp.pop %v721
    %v723 = vmul.f32 1.0, %v722
    %v724 = vtanh.pop %v713
    %v725 = vmul.f32 %v723, %v553
    %727 = vrot.lane.b32.xlu0 %v724, 64
    %v728 = vpop.permute.xlu0 %727
    %v730 = vmul.f32 %v723, %v728
    %732 = vrot.lane.b32.xlu0 %v730, 32
    %v733 = vpop.permute.xlu0 %732
    %v735 = vadd.f32 %v725, %v733
    %v736 = vtanh.pop %v735
    %738 = vrot.lane.b32.xlu0 %v736, 64
    %v739 = vpop.permute.xlu0 %738
    %v741 = vmul.f32 %v723, %v739
    %p742 = scmp.lt.s32.totalorder %s603, 8
    %s743 = scalar_select %p742, 1, 0
    %v744 = vstv %s743
    %vm745 = vcmp.eq.s32.totalorder %v744, 1
    %v746 = vsel %vm745, %v741, %v552
    %v747 = vsel %vm745, %v735, %v553
    %v748 = vpack.c.bf16 %v746, %v746
    %750 = vrot.lane.b32.xlu0 %v748, 32
    %v751 = vpop.permute.xlu0 %750
    %v753 = vsel %vm179, %v751, 0
    %755 = vmatprep.subr.bf16.mxu0 0
    %756 = vmatpush1.bf16.msra.mxu0 %v361
    %757 = vmatprep.subr.bf16.mxu0 0
    %758 = vmatpush1.bf16.msra.mxu0 %v362
    %759 = vmatprep.subr.bf16.mxu0 0
    %760 = vmatpush1.bf16.msra.mxu0 0
    %761 = vmatprep.subr.bf16.mxu0 0
    %762 = vmatpush1.bf16.msra.mxu0 0
    %763 = vmatprep.subr.bf16.mxu0 0
    %764 = vmatpush1.bf16.msra.mxu0 0
    %765 = vmatprep.subr.bf16.mxu0 0
    %766 = vmatpush1.bf16.msra.mxu0 0
    %767 = vmatprep.subr.bf16.mxu0 0
    %768 = vmatpush1.bf16.msra.mxu0 0
    %769 = vmatprep.subr.bf16.mxu0 0
    %770 = vmatpush1.bf16.msra.mxu0 0
    %771 = vmatprep.subr.bf16.mxu0 0
    %772 = vmatpush1.bf16.msra.mxu0 0
    %773 = vmatprep.subr.bf16.mxu0 0
    %774 = vmatpush1.bf16.msra.mxu0 0
    %775 = vmatprep.subr.bf16.mxu0 0
    %776 = vmatpush1.bf16.msra.mxu0 0
    %777 = vmatprep.subr.bf16.mxu0 0
    %778 = vmatpush1.bf16.msra.mxu0 0
    %779 = vmatprep.subr.bf16.mxu0 0
    %780 = vmatpush1.bf16.msra.mxu0 0
    %781 = vmatprep.subr.bf16.mxu0 0
    %782 = vmatpush1.bf16.msra.mxu0 0
    %783 = vmatprep.subr.bf16.mxu0 0
    %784 = vmatpush1.bf16.msra.mxu0 0
    %785 = vmatprep.subr.bf16.mxu0 0
    %786 = vmatpush1.bf16.msra.mxu0 0
    %787 = vmatprep.mubr.bf16.mxu0 0
    %788 = vmatmul.mubr.bf16.gmra.mrb[0].mxu0 %v753
    %v789 = vpop.f32.mrb[0].mxu0
    %v790 = vadd.f32 %v120, %v789
    %v791 = vpop.f32.mrb[0].mxu0
    %v792 = vpop.f32.mrb[0].mxu0
    %v793 = vpop.f32.mrb[0].mxu0
    %794 = vdwg.mxu0
    %s795 = scalar_lea.vmem [#allocation12], 16
    %796 = vst [vmem:[%s795] sm:$0xff] %v790
    %s797 = sadd.s32 %s127, 3
    %s798 = sld [smem:[#allocation3 + %s797]]
    %v799 = vstv %s798
    %vm800 = vcmp.eq.s32.totalorder %v124, %v799
    %vm801 = vmand %vm128, %vm800
    %v802 = vsel %vm801, 1.0, 0.0
    %s803 = sshra.s32 %s797, 7
    %s804 = sand.u32 %s797, 127
    %s805 = sadd.s32 %s803, 1
    %s806 = smul.u32 %s805, 128
    %s807 = sshra.s32 %s797, 7
    %s808 = sand.u32 %s797, 127
    %s809 = sadd.s32 %s806, %s808
    %s810 = sld [smem:[#allocation3 + %s809]]
    %v811 = vstv %s810
    %vm812 = vcmp.eq.s32.totalorder %v124, %v811
    %vm813 = vmand %vm134, %vm812
    %v814 = vsel %vm813, 1.0, %v802
    %s815 = sadd.s32 %s803, 2
    %s816 = smul.u32 %s815, 128
    %s817 = sadd.s32 %s816, %s808
    %s818 = sld [smem:[#allocation3 + %s817]]
    %v819 = vstv %s818
    %vm820 = vcmp.eq.s32.totalorder %v124, %v819
    %vm821 = vmand %vm147, %vm820
    %v822 = vsel %vm821, 1.0, %v814
    %s823 = sadd.s32 %s803, 3
    %s824 = smul.u32 %s823, 128
    %s825 = sadd.s32 %s824, %s808
    %s826 = sld [smem:[#allocation3 + %s825]]
    %v827 = vstv %s826
    %vm828 = vcmp.eq.s32.totalorder %v124, %v827
    %vm829 = vmand %vm156, %vm828
    %v830 = vsel %vm829, 1.0, %v822
    %v831 = vpack.c.bf16 %v830, %v830
    %832 = vmatprep.subr.bf16.mxu0 0
    %833 = vmatpush1.bf16.msra.mxu0 %v175
    %834 = vmatprep.subr.bf16.mxu0 0
    %835 = vmatpush1.bf16.msra.mxu0 %v176
    %836 = vmatprep.subr.bf16.mxu0 0
    %837 = vmatpush1.bf16.msra.mxu0 0
    %838 = vmatprep.subr.bf16.mxu0 0
    %839 = vmatpush1.bf16.msra.mxu0 0
    %840 = vmatprep.subr.bf16.mxu0 0
    %841 = vmatpush1.bf16.msra.mxu0 0
    %842 = vmatprep.subr.bf16.mxu0 0
    %843 = vmatpush1.bf16.msra.mxu0 0
    %844 = vmatprep.subr.bf16.mxu0 0
    %845 = vmatpush1.bf16.msra.mxu0 0
    %846 = vmatprep.subr.bf16.mxu0 0
    %847 = vmatpush1.bf16.msra.mxu0 0
    %848 = vmatprep.subr.bf16.mxu0 0
    %849 = vmatpush1.bf16.msra.mxu0 0
    %850 = vmatprep.subr.bf16.mxu0 0
    %851 = vmatpush1.bf16.msra.mxu0 0
    %852 = vmatprep.subr.bf16.mxu0 0
    %853 = vmatpush1.bf16.msra.mxu0 0
    %854 = vmatprep.subr.bf16.mxu0 0
    %855 = vmatpush1.bf16.msra.mxu0 0
    %856 = vmatprep.subr.bf16.mxu0 0
    %857 = vmatpush1.bf16.msra.mxu0 0
    %858 = vmatprep.subr.bf16.mxu0 0
    %859 = vmatpush1.bf16.msra.mxu0 0
    %860 = vmatprep.subr.bf16.mxu0 0
    %861 = vmatpush1.bf16.msra.mxu0 0
    %862 = vmatprep.subr.bf16.mxu0 0
    %863 = vmatpush1.bf16.msra.mxu0 0
    %864 = vmatprep.mubr.bf16.mxu0 0
    %865 = vmatmul.mubr.bf16.gmra.mrb[0].mxu0 %v753
    %v866 = vpop.f32.mrb[0].mxu0
    %v867 = vadd.f32 0.0, %v866
    %v868 = vpop.f32.mrb[0].mxu0
    %v869 = vpop.f32.mrb[0].mxu0
    %v870 = vpop.f32.mrb[0].mxu0
    %871 = vdwg.mxu0
    %872 = vmatprep.subr.bf16.mxu0 0
    %873 = vmatpush1.bf16.msra.mxu0 %v255
    %874 = vmatprep.subr.bf16.mxu0 0
    %875 = vmatpush1.bf16.msra.mxu0 %v256
    %876 = vmatprep.subr.bf16.mxu0 0
    %877 = vmatpush1.bf16.msra.mxu0 %v257
    %878 = vmatprep.subr.bf16.mxu0 0
    %879 = vmatpush1.bf16.msra.mxu0 %v258
    %880 = vmatprep.subr.bf16.mxu0 0
    %881 = vmatpush1.bf16.msra.mxu0 %v259
    %882 = vmatprep.subr.bf16.mxu0 0
    %883 = vmatpush1.bf16.msra.mxu0 %v260
    %884 = vmatprep.subr.bf16.mxu0 0
    %885 = vmatpush1.bf16.msra.mxu0 %v261
    %886 = vmatprep.subr.bf16.mxu0 0
    %887 = vmatpush1.bf16.msra.mxu0 %v262
    %888 = vmatprep.subr.bf16.mxu0 0
    %889 = vmatpush1.bf16.msra.mxu0 0
    %890 = vmatprep.subr.bf16.mxu0 0
    %891 = vmatpush1.bf16.msra.mxu0 0
    %892 = vmatprep.subr.bf16.mxu0 0
    %893 = vmatpush1.bf16.msra.mxu0 0
    %894 = vmatprep.subr.bf16.mxu0 0
    %895 = vmatpush1.bf16.msra.mxu0 0
    %896 = vmatprep.subr.bf16.mxu0 0
    %897 = vmatpush1.bf16.msra.mxu0 0
    %898 = vmatprep.subr.bf16.mxu0 0
    %899 = vmatpush1.bf16.msra.mxu0 0
    %900 = vmatprep.subr.bf16.mxu0 0
    %901 = vmatpush1.bf16.msra.mxu0 0
    %902 = vmatprep.subr.bf16.mxu0 0
    %903 = vmatpush1.bf16.msra.mxu0 0
    %904 = vmatprep.mubr.bf16.mxu0 0
    %905 = vmatmul.mubr.bf16.gmra.mrb[0].mxu0 %v831
    %v906 = vpop.f32.mrb[0].mxu0
    %v907 = vadd.f32 %v867, %v906
    %v908 = vpop.f32.mrb[0].mxu0
    %v909 = vpop.f32.mrb[0].mxu0
    %v910 = vpop.f32.mrb[0].mxu0
    %911 = vdwg.mxu0
    %v912 = vxor.u32 %v907, 2147483648
    %v913 = vmul.f32 %v912, 1.442695
    %v914 = vpow.pop %v913
    %v915 = vadd.f32 %v914, 1.0
    %v916 = vrcp.pop %v915
    %v917 = vmul.f32 1.0, %v916
    %v918 = vtanh.pop %v907
    %v919 = vmul.f32 %v917, %v747
    %921 = vrot.lane.b32.xlu0 %v918, 64
    %v922 = vpop.permute.xlu0 %921
    %v924 = vmul.f32 %v917, %v922
    %926 = vrot.lane.b32.xlu0 %v924, 32
    %v927 = vpop.permute.xlu0 %926
    %v929 = vadd.f32 %v919, %v927
    %v930 = vtanh.pop %v929
    %932 = vrot.lane.b32.xlu0 %v930, 64
    %v933 = vpop.permute.xlu0 %932
    %v935 = vmul.f32 %v917, %v933
    %p936 = scmp.lt.s32.totalorder %s797, 8
    %s937 = scalar_select %p936, 1, 0
    %v938 = vstv %s937
    %vm939 = vcmp.eq.s32.totalorder %v938, 1
    %v940 = vsel %vm939, %v935, %v746
    %v941 = vsel %vm939, %v929, %v747
    %v942 = vpack.c.bf16 %v940, %v940
    %944 = vrot.lane.b32.xlu0 %v942, 32
    %v945 = vpop.permute.xlu0 %944
    %v947 = vsel %vm179, %v945, 0
    %949 = vmatprep.subr.bf16.mxu0 0
    %950 = vmatpush1.bf16.msra.mxu0 %v361
    %951 = vmatprep.subr.bf16.mxu0 0
    %952 = vmatpush1.bf16.msra.mxu0 %v362
    %953 = vmatprep.subr.bf16.mxu0 0
    %954 = vmatpush1.bf16.msra.mxu0 0
    %955 = vmatprep.subr.bf16.mxu0 0
    %956 = vmatpush1.bf16.msra.mxu0 0
    %957 = vmatprep.subr.bf16.mxu0 0
    %958 = vmatpush1.bf16.msra.mxu0 0
    %959 = vmatprep.subr.bf16.mxu0 0
    %960 = vmatpush1.bf16.msra.mxu0 0
    %961 = vmatprep.subr.bf16.mxu0 0
    %962 = vmatpush1.bf16.msra.mxu0 0
    %963 = vmatprep.subr.bf16.mxu0 0
    %964 = vmatpush1.bf16.msra.mxu0 0
    %965 = vmatprep.subr.bf16.mxu0 0
    %966 = vmatpush1.bf16.msra.mxu0 0
    %967 = vmatprep.subr.bf16.mxu0 0
    %968 = vmatpush1.bf16.msra.mxu0 0
    %969 = vmatprep.subr.bf16.mxu0 0
    %970 = vmatpush1.bf16.msra.mxu0 0
    %971 = vmatprep.subr.bf16.mxu0 0
    %972 = vmatpush1.bf16.msra.mxu0 0
    %973 = vmatprep.subr.bf16.mxu0 0
    %974 = vmatpush1.bf16.msra.mxu0 0
    %975 = vmatprep.subr.bf16.mxu0 0
    %976 = vmatpush1.bf16.msra.mxu0 0
    %977 = vmatprep.subr.bf16.mxu0 0
    %978 = vmatpush1.bf16.msra.mxu0 0
    %979 = vmatprep.subr.bf16.mxu0 0
    %980 = vmatpush1.bf16.msra.mxu0 0
    %981 = vmatprep.mubr.bf16.mxu0 0
    %982 = vmatmul.mubr.bf16.gmra.mrb[0].mxu0 %v947
    %v983 = vpop.f32.mrb[0].mxu0
    %v984 = vadd.f32 %v120, %v983
    %v985 = vpop.f32.mrb[0].mxu0
    %v986 = vpop.f32.mrb[0].mxu0
    %v987 = vpop.f32.mrb[0].mxu0
    %988 = vdwg.mxu0
    %s989 = scalar_lea.vmem [#allocation12], 24
    %990 = vst [vmem:[%s989] sm:$0xff] %v984
    %s991 = sadd.s32 %s127, 4
    %s992 = sld [smem:[#allocation3 + %s991]]
    %v993 = vstv %s992
    %vm994 = vcmp.eq.s32.totalorder %v124, %v993
    %vm995 = vmand %vm128, %vm994
    %v996 = vsel %vm995, 1.0, 0.0
    %s997 = sshra.s32 %s991, 7
    %s998 = sand.u32 %s991, 127
    %s999 = sadd.s32 %s997, 1
    %s1000 = smul.u32 %s999, 128
    %s1001 = sshra.s32 %s991, 7
    %s1002 = sand.u32 %s991, 127
    %s1003 = sadd.s32 %s1000, %s1002
    %s1004 = sld [smem:[#allocation3 + %s1003]]
    %v1005 = vstv %s1004
    %vm1006 = vcmp.eq.s32.totalorder %v124, %v1005
    %vm1007 = vmand %vm134, %vm1006
    %v1008 = vsel %vm1007, 1.0, %v996
    %s1009 = sadd.s32 %s997, 2
    %s1010 = smul.u32 %s1009, 128
    %s1011 = sadd.s32 %s1010, %s1002
    %s1012 = sld [smem:[#allocation3 + %s1011]]
    %v1013 = vstv %s1012
    %vm1014 = vcmp.eq.s32.totalorder %v124, %v1013
    %vm1015 = vmand %vm147, %vm1014
    %v1016 = vsel %vm1015, 1.0, %v1008
    %s1017 = sadd.s32 %s997, 3
    %s1018 = smul.u32 %s1017, 128
    %s1019 = sadd.s32 %s1018, %s1002
    %s1020 = sld [smem:[#allocation3 + %s1019]]
    %v1021 = vstv %s1020
    %vm1022 = vcmp.eq.s32.totalorder %v124, %v1021
    %vm1023 = vmand %vm156, %vm1022
    %v1024 = vsel %vm1023, 1.0, %v1016
    %v1025 = vpack.c.bf16 %v1024, %v1024
    %1026 = vmatprep.subr.bf16.mxu0 0
    %1027 = vmatpush1.bf16.msra.mxu0 %v175
    %1028 = vmatprep.subr.bf16.mxu0 0
    %1029 = vmatpush1.bf16.msra.mxu0 %v176
    %1030 = vmatprep.subr.bf16.mxu0 0
    %1031 = vmatpush1.bf16.msra.mxu0 0
    %1032 = vmatprep.subr.bf16.mxu0 0
    %1033 = vmatpush1.bf16.msra.mxu0 0
    %1034 = vmatprep.subr.bf16.mxu0 0
    %1035 = vmatpush1.bf16.msra.mxu0 0
    %1036 = vmatprep.subr.bf16.mxu0 0
    %1037 = vmatpush1.bf16.msra.mxu0 0
    %1038 = vmatprep.subr.bf16.mxu0 0
    %1039 = vmatpush1.bf16.msra.mxu0 0
    %1040 = vmatprep.subr.bf16.mxu0 0
    %1041 = vmatpush1.bf16.msra.mxu0 0
    %1042 = vmatprep.subr.bf16.mxu0 0
    %1043 = vmatpush1.bf16.msra.mxu0 0
    %1044 = vmatprep.subr.bf16.mxu0 0
    %1045 = vmatpush1.bf16.msra.mxu0 0
    %1046 = vmatprep.subr.bf16.mxu0 0
    %1047 = vmatpush1.bf16.msra.mxu0 0
    %1048 = vmatprep.subr.bf16.mxu0 0
    %1049 = vmatpush1.bf16.msra.mxu0 0
    %1050 = vmatprep.subr.bf16.mxu0 0
    %1051 = vmatpush1.bf16.msra.mxu0 0
    %1052 = vmatprep.subr.bf16.mxu0 0
    %1053 = vmatpush1.bf16.msra.mxu0 0
    %1054 = vmatprep.subr.bf16.mxu0 0
    %1055 = vmatpush1.bf16.msra.mxu0 0
    %1056 = vmatprep.subr.bf16.mxu0 0
    %1057 = vmatpush1.bf16.msra.mxu0 0
    %1058 = vmatprep.mubr.bf16.mxu0 0
    %1059 = vmatmul.mubr.bf16.gmra.mrb[0].mxu0 %v947
    %v1060 = vpop.f32.mrb[0].mxu0
    %v1061 = vadd.f32 0.0, %v1060
    %v1062 = vpop.f32.mrb[0].mxu0
    %v1063 = vpop.f32.mrb[0].mxu0
    %v1064 = vpop.f32.mrb[0].mxu0
    %1065 = vdwg.mxu0
    %1066 = vmatprep.subr.bf16.mxu0 0
    %1067 = vmatpush1.bf16.msra.mxu0 %v255
    %1068 = vmatprep.subr.bf16.mxu0 0
    %1069 = vmatpush1.bf16.msra.mxu0 %v256
    %1070 = vmatprep.subr.bf16.mxu0 0
    %1071 = vmatpush1.bf16.msra.mxu0 %v257
    %1072 = vmatprep.subr.bf16.mxu0 0
    %1073 = vmatpush1.bf16.msra.mxu0 %v258
    %1074 = vmatprep.subr.bf16.mxu0 0
    %1075 = vmatpush1.bf16.msra.mxu0 %v259
    %1076 = vmatprep.subr.bf16.mxu0 0
    %1077 = vmatpush1.bf16.msra.mxu0 %v260
    %1078 = vmatprep.subr.bf16.mxu0 0
    %1079 = vmatpush1.bf16.msra.mxu0 %v261
    %1080 = vmatprep.subr.bf16.mxu0 0
    %1081 = vmatpush1.bf16.msra.mxu0 %v262
    %1082 = vmatprep.subr.bf16.mxu0 0
    %1083 = vmatpush1.bf16.msra.mxu0 0
    %1084 = vmatprep.subr.bf16.mxu0 0
    %1085 = vmatpush1.bf16.msra.mxu0 0
    %1086 = vmatprep.subr.bf16.mxu0 0
    %1087 = vmatpush1.bf16.msra.mxu0 0
    %1088 = vmatprep.subr.bf16.mxu0 0
    %1089 = vmatpush1.bf16.msra.mxu0 0
    %1090 = vmatprep.subr.bf16.mxu0 0
    %1091 = vmatpush1.bf16.msra.mxu0 0
    %1092 = vmatprep.subr.bf16.mxu0 0
    %1093 = vmatpush1.bf16.msra.mxu0 0
    %1094 = vmatprep.subr.bf16.mxu0 0
    %1095 = vmatpush1.bf16.msra.mxu0 0
    %1096 = vmatprep.subr.bf16.mxu0 0
    %1097 = vmatpush1.bf16.msra.mxu0 0
    %1098 = vmatprep.mubr.bf16.mxu0 0
    %1099 = vmatmul.mubr.bf16.gmra.mrb[0].mxu0 %v1025
    %v1100 = vpop.f32.mrb[0].mxu0
    %v1101 = vadd.f32 %v1061, %v1100
    %v1102 = vpop.f32.mrb[0].mxu0
    %v1103 = vpop.f32.mrb[0].mxu0
    %v1104 = vpop.f32.mrb[0].mxu0
    %1105 = vdwg.mxu0
    %v1106 = vxor.u32 %v1101, 2147483648
    %v1107 = vmul.f32 %v1106, 1.442695
    %v1108 = vpow.pop %v1107
    %v1109 = vadd.f32 %v1108, 1.0
    %v1110 = vrcp.pop %v1109
    %v1111 = vmul.f32 1.0, %v1110
    %v1112 = vtanh.pop %v1101
    %v1113 = vmul.f32 %v1111, %v941
    %1115 = vrot.lane.b32.xlu0 %v1112, 64
    %v1116 = vpop.permute.xlu0 %1115
    %v1118 = vmul.f32 %v1111, %v1116
    %1120 = vrot.lane.b32.xlu0 %v1118, 32
    %v1121 = vpop.permute.xlu0 %1120
    %v1123 = vadd.f32 %v1113, %v1121
    %v1124 = vtanh.pop %v1123
    %1126 = vrot.lane.b32.xlu0 %v1124, 64
    %v1127 = vpop.permute.xlu0 %1126
    %v1129 = vmul.f32 %v1111, %v1127
    %p1130 = scmp.lt.s32.totalorder %s991, 8
    %s1131 = scalar_select %p1130, 1, 0
    %v1132 = vstv %s1131
    %vm1133 = vcmp.eq.s32.totalorder %v1132, 1
    %v1134 = vsel %vm1133, %v1129, %v940
    %v1135 = vsel %vm1133, %v1123, %v941
    %v1136 = vpack.c.bf16 %v1134, %v1134
    %1138 = vrot.lane.b32.xlu0 %v1136, 32
    %v1139 = vpop.permute.xlu0 %1138
    %v1141 = vsel %vm179, %v1139, 0
    %1143 = vmatprep.subr.bf16.mxu0 0
    %1144 = vmatpush1.bf16.msra.mxu0 %v361
    %1145 = vmatprep.subr.bf16.mxu0 0
    %1146 = vmatpush1.bf16.msra.mxu0 %v362
    %1147 = vmatprep.subr.bf16.mxu0 0
    %1148 = vmatpush1.bf16.msra.mxu0 0
    %1149 = vmatprep.subr.bf16.mxu0 0
    %1150 = vmatpush1.bf16.msra.mxu0 0
    %1151 = vmatprep.subr.bf16.mxu0 0
    %1152 = vmatpush1.bf16.msra.mxu0 0
    %1153 = vmatprep.subr.bf16.mxu0 0
    %1154 = vmatpush1.bf16.msra.mxu0 0
    %1155 = vmatprep.subr.bf16.mxu0 0
    %1156 = vmatpush1.bf16.msra.mxu0 0
    %1157 = vmatprep.subr.bf16.mxu0 0
    %1158 = vmatpush1.bf16.msra.mxu0 0
    %1159 = vmatprep.subr.bf16.mxu0 0
    %1160 = vmatpush1.bf16.msra.mxu0 0
    %1161 = vmatprep.subr.bf16.mxu0 0
    %1162 = vmatpush1.bf16.msra.mxu0 0
    %1163 = vmatprep.subr.bf16.mxu0 0
    %1164 = vmatpush1.bf16.msra.mxu0 0
    %1165 = vmatprep.subr.bf16.mxu0 0
    %1166 = vmatpush1.bf16.msra.mxu0 0
    %1167 = vmatprep.subr.bf16.mxu0 0
    %1168 = vmatpush1.bf16.msra.mxu0 0
    %1169 = vmatprep.subr.bf16.mxu0 0
    %1170 = vmatpush1.bf16.msra.mxu0 0
    %1171 = vmatprep.subr.bf16.mxu0 0
    %1172 = vmatpush1.bf16.msra.mxu0 0
    %1173 = vmatprep.subr.bf16.mxu0 0
    %1174 = vmatpush1.bf16.msra.mxu0 0
    %1175 = vmatprep.mubr.bf16.mxu0 0
    %1176 = vmatmul.mubr.bf16.gmra.mrb[0].mxu0 %v1141
    %v1177 = vpop.f32.mrb[0].mxu0
    %v1178 = vadd.f32 %v120, %v1177
    %v1179 = vpop.f32.mrb[0].mxu0
    %v1180 = vpop.f32.mrb[0].mxu0
    %v1181 = vpop.f32.mrb[0].mxu0
    %1182 = vdwg.mxu0
    %s1183 = scalar_lea.vmem [#allocation12], 32
    %1184 = vst [vmem:[%s1183] sm:$0xff] %v1178
    %s1185 = sadd.s32 %s127, 5
    %s1186 = sld [smem:[#allocation3 + %s1185]]
    %v1187 = vstv %s1186
    %vm1188 = vcmp.eq.s32.totalorder %v124, %v1187
    %vm1189 = vmand %vm128, %vm1188
    %v1190 = vsel %vm1189, 1.0, 0.0
    %s1191 = sshra.s32 %s1185, 7
    %s1192 = sand.u32 %s1185, 127
    %s1193 = sadd.s32 %s1191, 1
    %s1194 = smul.u32 %s1193, 128
    %s1195 = sshra.s32 %s1185, 7
    %s1196 = sand.u32 %s1185, 127
    %s1197 = sadd.s32 %s1194, %s1196
    %s1198 = sld [smem:[#allocation3 + %s1197]]
    %v1199 = vstv %s1198
    %vm1200 = vcmp.eq.s32.totalorder %v124, %v1199
    %vm1201 = vmand %vm134, %vm1200
    %v1202 = vsel %vm1201, 1.0, %v1190
    %s1203 = sadd.s32 %s1191, 2
    %s1204 = smul.u32 %s1203, 128
    %s1205 = sadd.s32 %s1204, %s1196
    %s1206 = sld [smem:[#allocation3 + %s1205]]
    %v1207 = vstv %s1206
    %vm1208 = vcmp.eq.s32.totalorder %v124, %v1207
    %vm1209 = vmand %vm147, %vm1208
    %v1210 = vsel %vm1209, 1.0, %v1202
    %s1211 = sadd.s32 %s1191, 3
    %s1212 = smul.u32 %s1211, 128
    %s1213 = sadd.s32 %s1212, %s1196
    %s1214 = sld [smem:[#allocation3 + %s1213]]
    %v1215 = vstv %s1214
    %vm1216 = vcmp.eq.s32.totalorder %v124, %v1215
    %vm1217 = vmand %vm156, %vm1216
    %v1218 = vsel %vm1217, 1.0, %v1210
    %v1219 = vpack.c.bf16 %v1218, %v1218
    %1220 = vmatprep.subr.bf16.mxu0 0
    %1221 = vmatpush1.bf16.msra.mxu0 %v175
    %1222 = vmatprep.subr.bf16.mxu0 0
    %1223 = vmatpush1.bf16.msra.mxu0 %v176
    %1224 = vmatprep.subr.bf16.mxu0 0
    %1225 = vmatpush1.bf16.msra.mxu0 0
    %1226 = vmatprep.subr.bf16.mxu0 0
    %1227 = vmatpush1.bf16.msra.mxu0 0
    %1228 = vmatprep.subr.bf16.mxu0 0
    %1229 = vmatpush1.bf16.msra.mxu0 0
    %1230 = vmatprep.subr.bf16.mxu0 0
    %1231 = vmatpush1.bf16.msra.mxu0 0
    %1232 = vmatprep.subr.bf16.mxu0 0
    %1233 = vmatpush1.bf16.msra.mxu0 0
    %1234 = vmatprep.subr.bf16.mxu0 0
    %1235 = vmatpush1.bf16.msra.mxu0 0
    %1236 = vmatprep.subr.bf16.mxu0 0
    %1237 = vmatpush1.bf16.msra.mxu0 0
    %1238 = vmatprep.subr.bf16.mxu0 0
    %1239 = vmatpush1.bf16.msra.mxu0 0
    %1240 = vmatprep.subr.bf16.mxu0 0
    %1241 = vmatpush1.bf16.msra.mxu0 0
    %1242 = vmatprep.subr.bf16.mxu0 0
    %1243 = vmatpush1.bf16.msra.mxu0 0
    %1244 = vmatprep.subr.bf16.mxu0 0
    %1245 = vmatpush1.bf16.msra.mxu0 0
    %1246 = vmatprep.subr.bf16.mxu0 0
    %1247 = vmatpush1.bf16.msra.mxu0 0
    %1248 = vmatprep.subr.bf16.mxu0 0
    %1249 = vmatpush1.bf16.msra.mxu0 0
    %1250 = vmatprep.subr.bf16.mxu0 0
    %1251 = vmatpush1.bf16.msra.mxu0 0
    %1252 = vmatprep.mubr.bf16.mxu0 0
    %1253 = vmatmul.mubr.bf16.gmra.mrb[0].mxu0 %v1141
    %v1254 = vpop.f32.mrb[0].mxu0
    %v1255 = vadd.f32 0.0, %v1254
    %v1256 = vpop.f32.mrb[0].mxu0
    %v1257 = vpop.f32.mrb[0].mxu0
    %v1258 = vpop.f32.mrb[0].mxu0
    %1259 = vdwg.mxu0
    %1260 = vmatprep.subr.bf16.mxu0 0
    %1261 = vmatpush1.bf16.msra.mxu0 %v255
    %1262 = vmatprep.subr.bf16.mxu0 0
    %1263 = vmatpush1.bf16.msra.mxu0 %v256
    %1264 = vmatprep.subr.bf16.mxu0 0
    %1265 = vmatpush1.bf16.msra.mxu0 %v257
    %1266 = vmatprep.subr.bf16.mxu0 0
    %1267 = vmatpush1.bf16.msra.mxu0 %v258
    %1268 = vmatprep.subr.bf16.mxu0 0
    %1269 = vmatpush1.bf16.msra.mxu0 %v259
    %1270 = vmatprep.subr.bf16.mxu0 0
    %1271 = vmatpush1.bf16.msra.mxu0 %v260
    %1272 = vmatprep.subr.bf16.mxu0 0
    %1273 = vmatpush1.bf16.msra.mxu0 %v261
    %1274 = vmatprep.subr.bf16.mxu0 0
    %1275 = vmatpush1.bf16.msra.mxu0 %v262
    %1276 = vmatprep.subr.bf16.mxu0 0
    %1277 = vmatpush1.bf16.msra.mxu0 0
    %1278 = vmatprep.subr.bf16.mxu0 0
    %1279 = vmatpush1.bf16.msra.mxu0 0
    %1280 = vmatprep.subr.bf16.mxu0 0
    %1281 = vmatpush1.bf16.msra.mxu0 0
    %1282 = vmatprep.subr.bf16.mxu0 0
    %1283 = vmatpush1.bf16.msra.mxu0 0
    %1284 = vmatprep.subr.bf16.mxu0 0
    %1285 = vmatpush1.bf16.msra.mxu0 0
    %1286 = vmatprep.subr.bf16.mxu0 0
    %1287 = vmatpush1.bf16.msra.mxu0 0
    %1288 = vmatprep.subr.bf16.mxu0 0
    %1289 = vmatpush1.bf16.msra.mxu0 0
    %1290 = vmatprep.subr.bf16.mxu0 0
    %1291 = vmatpush1.bf16.msra.mxu0 0
    %1292 = vmatprep.mubr.bf16.mxu0 0
    %1293 = vmatmul.mubr.bf16.gmra.mrb[0].mxu0 %v1219
    %v1294 = vpop.f32.mrb[0].mxu0
    %v1295 = vadd.f32 %v1255, %v1294
    %v1296 = vpop.f32.mrb[0].mxu0
    %v1297 = vpop.f32.mrb[0].mxu0
    %v1298 = vpop.f32.mrb[0].mxu0
    %1299 = vdwg.mxu0
    %v1300 = vxor.u32 %v1295, 2147483648
    %v1301 = vmul.f32 %v1300, 1.442695
    %v1302 = vpow.pop %v1301
    %v1303 = vadd.f32 %v1302, 1.0
    %v1304 = vrcp.pop %v1303
    %v1305 = vmul.f32 1.0, %v1304
    %v1306 = vtanh.pop %v1295
    %v1307 = vmul.f32 %v1305, %v1135
    %1309 = vrot.lane.b32.xlu0 %v1306, 64
    %v1310 = vpop.permute.xlu0 %1309
    %v1312 = vmul.f32 %v1305, %v1310
    %1314 = vrot.lane.b32.xlu0 %v1312, 32
    %v1315 = vpop.permute.xlu0 %1314
    %v1317 = vadd.f32 %v1307, %v1315
    %v1318 = vtanh.pop %v1317
    %1320 = vrot.lane.b32.xlu0 %v1318, 64
    %v1321 = vpop.permute.xlu0 %1320
    %v1323 = vmul.f32 %v1305, %v1321
    %p1324 = scmp.lt.s32.totalorder %s1185, 8
    %s1325 = scalar_select %p1324, 1, 0
    %v1326 = vstv %s1325
    %vm1327 = vcmp.eq.s32.totalorder %v1326, 1
    %v1328 = vsel %vm1327, %v1323, %v1134
    %v1329 = vsel %vm1327, %v1317, %v1135
    %v1330 = vpack.c.bf16 %v1328, %v1328
    %1332 = vrot.lane.b32.xlu0 %v1330, 32
    %v1333 = vpop.permute.xlu0 %1332
    %v1335 = vsel %vm179, %v1333, 0
    %1337 = vmatprep.subr.bf16.mxu0 0
    %1338 = vmatpush1.bf16.msra.mxu0 %v361
    %1339 = vmatprep.subr.bf16.mxu0 0
    %1340 = vmatpush1.bf16.msra.mxu0 %v362
    %1341 = vmatprep.subr.bf16.mxu0 0
    %1342 = vmatpush1.bf16.msra.mxu0 0
    %1343 = vmatprep.subr.bf16.mxu0 0
    %1344 = vmatpush1.bf16.msra.mxu0 0
    %1345 = vmatprep.subr.bf16.mxu0 0
    %1346 = vmatpush1.bf16.msra.mxu0 0
    %1347 = vmatprep.subr.bf16.mxu0 0
    %1348 = vmatpush1.bf16.msra.mxu0 0
    %1349 = vmatprep.subr.bf16.mxu0 0
    %1350 = vmatpush1.bf16.msra.mxu0 0
    %1351 = vmatprep.subr.bf16.mxu0 0
    %1352 = vmatpush1.bf16.msra.mxu0 0
    %1353 = vmatprep.subr.bf16.mxu0 0
    %1354 = vmatpush1.bf16.msra.mxu0 0
    %1355 = vmatprep.subr.bf16.mxu0 0
    %1356 = vmatpush1.bf16.msra.mxu0 0
    %1357 = vmatprep.subr.bf16.mxu0 0
    %1358 = vmatpush1.bf16.msra.mxu0 0
    %1359 = vmatprep.subr.bf16.mxu0 0
    %1360 = vmatpush1.bf16.msra.mxu0 0
    %1361 = vmatprep.subr.bf16.mxu0 0
    %1362 = vmatpush1.bf16.msra.mxu0 0
    %1363 = vmatprep.subr.bf16.mxu0 0
    %1364 = vmatpush1.bf16.msra.mxu0 0
    %1365 = vmatprep.subr.bf16.mxu0 0
    %1366 = vmatpush1.bf16.msra.mxu0 0
    %1367 = vmatprep.subr.bf16.mxu0 0
    %1368 = vmatpush1.bf16.msra.mxu0 0
    %1369 = vmatprep.mubr.bf16.mxu0 0
    %1370 = vmatmul.mubr.bf16.gmra.mrb[0].mxu0 %v1335
    %v1371 = vpop.f32.mrb[0].mxu0
    %v1372 = vadd.f32 %v120, %v1371
    %v1373 = vpop.f32.mrb[0].mxu0
    %v1374 = vpop.f32.mrb[0].mxu0
    %v1375 = vpop.f32.mrb[0].mxu0
    %1376 = vdwg.mxu0
    %s1377 = scalar_lea.vmem [#allocation12], 40
    %1378 = vst [vmem:[%s1377] sm:$0xff] %v1372
    %s1379 = sadd.s32 %s127, 6
    %s1380 = sld [smem:[#allocation3 + %s1379]]
    %v1381 = vstv %s1380
    %vm1382 = vcmp.eq.s32.totalorder %v124, %v1381
    %vm1383 = vmand %vm128, %vm1382
    %v1384 = vsel %vm1383, 1.0, 0.0
    %s1385 = sshra.s32 %s1379, 7
    %s1386 = sand.u32 %s1379, 127
    %s1387 = sadd.s32 %s1385, 1
    %s1388 = smul.u32 %s1387, 128
    %s1389 = sshra.s32 %s1379, 7
    %s1390 = sand.u32 %s1379, 127
    %s1391 = sadd.s32 %s1388, %s1390
    %s1392 = sld [smem:[#allocation3 + %s1391]]
    %v1393 = vstv %s1392
    %vm1394 = vcmp.eq.s32.totalorder %v124, %v1393
    %vm1395 = vmand %vm134, %vm1394
    %v1396 = vsel %vm1395, 1.0, %v1384
    %s1397 = sadd.s32 %s1385, 2
    %s1398 = smul.u32 %s1397, 128
    %s1399 = sadd.s32 %s1398, %s1390
    %s1400 = sld [smem:[#allocation3 + %s1399]]
    %v1401 = vstv %s1400
    %vm1402 = vcmp.eq.s32.totalorder %v124, %v1401
    %vm1403 = vmand %vm147, %vm1402
    %v1404 = vsel %vm1403, 1.0, %v1396
    %s1405 = sadd.s32 %s1385, 3
    %s1406 = smul.u32 %s1405, 128
    %s1407 = sadd.s32 %s1406, %s1390
    %s1408 = sld [smem:[#allocation3 + %s1407]]
    %v1409 = vstv %s1408
    %vm1410 = vcmp.eq.s32.totalorder %v124, %v1409
    %vm1411 = vmand %vm156, %vm1410
    %v1412 = vsel %vm1411, 1.0, %v1404
    %v1413 = vpack.c.bf16 %v1412, %v1412
    %1414 = vmatprep.subr.bf16.mxu0 0
    %1415 = vmatpush1.bf16.msra.mxu0 %v175
    %1416 = vmatprep.subr.bf16.mxu0 0
    %1417 = vmatpush1.bf16.msra.mxu0 %v176
    %1418 = vmatprep.subr.bf16.mxu0 0
    %1419 = vmatpush1.bf16.msra.mxu0 0
    %1420 = vmatprep.subr.bf16.mxu0 0
    %1421 = vmatpush1.bf16.msra.mxu0 0
    %1422 = vmatprep.subr.bf16.mxu0 0
    %1423 = vmatpush1.bf16.msra.mxu0 0
    %1424 = vmatprep.subr.bf16.mxu0 0
    %1425 = vmatpush1.bf16.msra.mxu0 0
    %1426 = vmatprep.subr.bf16.mxu0 0
    %1427 = vmatpush1.bf16.msra.mxu0 0
    %1428 = vmatprep.subr.bf16.mxu0 0
    %1429 = vmatpush1.bf16.msra.mxu0 0
    %1430 = vmatprep.subr.bf16.mxu0 0
    %1431 = vmatpush1.bf16.msra.mxu0 0
    %1432 = vmatprep.subr.bf16.mxu0 0
    %1433 = vmatpush1.bf16.msra.mxu0 0
    %1434 = vmatprep.subr.bf16.mxu0 0
    %1435 = vmatpush1.bf16.msra.mxu0 0
    %1436 = vmatprep.subr.bf16.mxu0 0
    %1437 = vmatpush1.bf16.msra.mxu0 0
    %1438 = vmatprep.subr.bf16.mxu0 0
    %1439 = vmatpush1.bf16.msra.mxu0 0
    %1440 = vmatprep.subr.bf16.mxu0 0
    %1441 = vmatpush1.bf16.msra.mxu0 0
    %1442 = vmatprep.subr.bf16.mxu0 0
    %1443 = vmatpush1.bf16.msra.mxu0 0
    %1444 = vmatprep.subr.bf16.mxu0 0
    %1445 = vmatpush1.bf16.msra.mxu0 0
    %1446 = vmatprep.mubr.bf16.mxu0 0
    %1447 = vmatmul.mubr.bf16.gmra.mrb[0].mxu0 %v1335
    %v1448 = vpop.f32.mrb[0].mxu0
    %v1449 = vadd.f32 0.0, %v1448
    %v1450 = vpop.f32.mrb[0].mxu0
    %v1451 = vpop.f32.mrb[0].mxu0
    %v1452 = vpop.f32.mrb[0].mxu0
    %1453 = vdwg.mxu0
    %1454 = vmatprep.subr.bf16.mxu0 0
    %1455 = vmatpush1.bf16.msra.mxu0 %v255
    %1456 = vmatprep.subr.bf16.mxu0 0
    %1457 = vmatpush1.bf16.msra.mxu0 %v256
    %1458 = vmatprep.subr.bf16.mxu0 0
    %1459 = vmatpush1.bf16.msra.mxu0 %v257
    %1460 = vmatprep.subr.bf16.mxu0 0
    %1461 = vmatpush1.bf16.msra.mxu0 %v258
    %1462 = vmatprep.subr.bf16.mxu0 0
    %1463 = vmatpush1.bf16.msra.mxu0 %v259
    %1464 = vmatprep.subr.bf16.mxu0 0
    %1465 = vmatpush1.bf16.msra.mxu0 %v260
    %1466 = vmatprep.subr.bf16.mxu0 0
    %1467 = vmatpush1.bf16.msra.mxu0 %v261
    %1468 = vmatprep.subr.bf16.mxu0 0
    %1469 = vmatpush1.bf16.msra.mxu0 %v262
    %1470 = vmatprep.subr.bf16.mxu0 0
    %1471 = vmatpush1.bf16.msra.mxu0 0
    %1472 = vmatprep.subr.bf16.mxu0 0
    %1473 = vmatpush1.bf16.msra.mxu0 0
    %1474 = vmatprep.subr.bf16.mxu0 0
    %1475 = vmatpush1.bf16.msra.mxu0 0
    %1476 = vmatprep.subr.bf16.mxu0 0
    %1477 = vmatpush1.bf16.msra.mxu0 0
    %1478 = vmatprep.subr.bf16.mxu0 0
    %1479 = vmatpush1.bf16.msra.mxu0 0
    %1480 = vmatprep.subr.bf16.mxu0 0
    %1481 = vmatpush1.bf16.msra.mxu0 0
    %1482 = vmatprep.subr.bf16.mxu0 0
    %1483 = vmatpush1.bf16.msra.mxu0 0
    %1484 = vmatprep.subr.bf16.mxu0 0
    %1485 = vmatpush1.bf16.msra.mxu0 0
    %1486 = vmatprep.mubr.bf16.mxu0 0
    %1487 = vmatmul.mubr.bf16.gmra.mrb[0].mxu0 %v1413
    %v1488 = vpop.f32.mrb[0].mxu0
    %v1489 = vadd.f32 %v1449, %v1488
    %v1490 = vpop.f32.mrb[0].mxu0
    %v1491 = vpop.f32.mrb[0].mxu0
    %v1492 = vpop.f32.mrb[0].mxu0
    %1493 = vdwg.mxu0
    %v1494 = vxor.u32 %v1489, 2147483648
    %v1495 = vmul.f32 %v1494, 1.442695
    %v1496 = vpow.pop %v1495
    %v1497 = vadd.f32 %v1496, 1.0
    %v1498 = vrcp.pop %v1497
    %v1499 = vmul.f32 1.0, %v1498
    %v1500 = vtanh.pop %v1489
    %v1501 = vmul.f32 %v1499, %v1329
    %1503 = vrot.lane.b32.xlu0 %v1500, 64
    %v1504 = vpop.permute.xlu0 %1503
    %v1506 = vmul.f32 %v1499, %v1504
    %1508 = vrot.lane.b32.xlu0 %v1506, 32
    %v1509 = vpop.permute.xlu0 %1508
    %v1511 = vadd.f32 %v1501, %v1509
    %v1512 = vtanh.pop %v1511
    %1514 = vrot.lane.b32.xlu0 %v1512, 64
    %v1515 = vpop.permute.xlu0 %1514
    %v1517 = vmul.f32 %v1499, %v1515
    %p1518 = scmp.lt.s32.totalorder %s1379, 8
    %s1519 = scalar_select %p1518, 1, 0
    %v1520 = vstv %s1519
    %vm1521 = vcmp.eq.s32.totalorder %v1520, 1
    %v1522 = vsel %vm1521, %v1517, %v1328
    %v1523 = vsel %vm1521, %v1511, %v1329
    %v1524 = vpack.c.bf16 %v1522, %v1522
    %1526 = vrot.lane.b32.xlu0 %v1524, 32
    %v1527 = vpop.permute.xlu0 %1526
    %v1529 = vsel %vm179, %v1527, 0
    %1531 = vmatprep.subr.bf16.mxu0 0
    %1532 = vmatpush1.bf16.msra.mxu0 %v361
    %1533 = vmatprep.subr.bf16.mxu0 0
    %1534 = vmatpush1.bf16.msra.mxu0 %v362
    %1535 = vmatprep.subr.bf16.mxu0 0
    %1536 = vmatpush1.bf16.msra.mxu0 0
    %1537 = vmatprep.subr.bf16.mxu0 0
    %1538 = vmatpush1.bf16.msra.mxu0 0
    %1539 = vmatprep.subr.bf16.mxu0 0
    %1540 = vmatpush1.bf16.msra.mxu0 0
    %1541 = vmatprep.subr.bf16.mxu0 0
    %1542 = vmatpush1.bf16.msra.mxu0 0
    %1543 = vmatprep.subr.bf16.mxu0 0
    %1544 = vmatpush1.bf16.msra.mxu0 0
    %1545 = vmatprep.subr.bf16.mxu0 0
    %1546 = vmatpush1.bf16.msra.mxu0 0
    %1547 = vmatprep.subr.bf16.mxu0 0
    %1548 = vmatpush1.bf16.msra.mxu0 0
    %1549 = vmatprep.subr.bf16.mxu0 0
    %1550 = vmatpush1.bf16.msra.mxu0 0
    %1551 = vmatprep.subr.bf16.mxu0 0
    %1552 = vmatpush1.bf16.msra.mxu0 0
    %1553 = vmatprep.subr.bf16.mxu0 0
    %1554 = vmatpush1.bf16.msra.mxu0 0
    %1555 = vmatprep.subr.bf16.mxu0 0
    %1556 = vmatpush1.bf16.msra.mxu0 0
    %1557 = vmatprep.subr.bf16.mxu0 0
    %1558 = vmatpush1.bf16.msra.mxu0 0
    %1559 = vmatprep.subr.bf16.mxu0 0
    %1560 = vmatpush1.bf16.msra.mxu0 0
    %1561 = vmatprep.subr.bf16.mxu0 0
    %1562 = vmatpush1.bf16.msra.mxu0 0
    %1563 = vmatprep.mubr.bf16.mxu0 0
    %1564 = vmatmul.mubr.bf16.gmra.mrb[0].mxu0 %v1529
    %v1565 = vpop.f32.mrb[0].mxu0
    %v1566 = vadd.f32 %v120, %v1565
    %v1567 = vpop.f32.mrb[0].mxu0
    %v1568 = vpop.f32.mrb[0].mxu0
    %v1569 = vpop.f32.mrb[0].mxu0
    %1570 = vdwg.mxu0
    %s1571 = scalar_lea.vmem [#allocation12], 48
    %1572 = vst [vmem:[%s1571] sm:$0xff] %v1566
    %s1573 = sadd.s32 %s127, 7
    %s1574 = sld [smem:[#allocation3 + %s1573]]
    %v1575 = vstv %s1574
    %vm1576 = vcmp.eq.s32.totalorder %v124, %v1575
    %vm1577 = vmand %vm128, %vm1576
    %v1578 = vsel %vm1577, 1.0, 0.0
    %s1579 = sshra.s32 %s1573, 7
    %s1580 = sand.u32 %s1573, 127
    %s1581 = sadd.s32 %s1579, 1
    %s1582 = smul.u32 %s1581, 128
    %s1583 = sshra.s32 %s1573, 7
    %s1584 = sand.u32 %s1573, 127
    %s1585 = sadd.s32 %s1582, %s1584
    %s1586 = sld [smem:[#allocation3 + %s1585]]
    %v1587 = vstv %s1586
    %vm1588 = vcmp.eq.s32.totalorder %v124, %v1587
    %vm1589 = vmand %vm134, %vm1588
    %v1590 = vsel %vm1589, 1.0, %v1578
    %s1591 = sadd.s32 %s1579, 2
    %s1592 = smul.u32 %s1591, 128
    %s1593 = sadd.s32 %s1592, %s1584
    %s1594 = sld [smem:[#allocation3 + %s1593]]
    %v1595 = vstv %s1594
    %vm1596 = vcmp.eq.s32.totalorder %v124, %v1595
    %vm1597 = vmand %vm147, %vm1596
    %v1598 = vsel %vm1597, 1.0, %v1590
    %s1599 = sadd.s32 %s1579, 3
    %s1600 = smul.u32 %s1599, 128
    %s1601 = sadd.s32 %s1600, %s1584
    %s1602 = sld [smem:[#allocation3 + %s1601]]
    %v1603 = vstv %s1602
    %vm1604 = vcmp.eq.s32.totalorder %v124, %v1603
    %vm1605 = vmand %vm156, %vm1604
    %v1606 = vsel %vm1605, 1.0, %v1598
    %v1607 = vpack.c.bf16 %v1606, %v1606
    %1608 = vmatprep.subr.bf16.mxu0 0
    %1609 = vmatpush1.bf16.msra.mxu0 %v175
    %1610 = vmatprep.subr.bf16.mxu0 0
    %1611 = vmatpush1.bf16.msra.mxu0 %v176
    %1612 = vmatprep.subr.bf16.mxu0 0
    %1613 = vmatpush1.bf16.msra.mxu0 0
    %1614 = vmatprep.subr.bf16.mxu0 0
    %1615 = vmatpush1.bf16.msra.mxu0 0
    %1616 = vmatprep.subr.bf16.mxu0 0
    %1617 = vmatpush1.bf16.msra.mxu0 0
    %1618 = vmatprep.subr.bf16.mxu0 0
    %1619 = vmatpush1.bf16.msra.mxu0 0
    %1620 = vmatprep.subr.bf16.mxu0 0
    %1621 = vmatpush1.bf16.msra.mxu0 0
    %1622 = vmatprep.subr.bf16.mxu0 0
    %1623 = vmatpush1.bf16.msra.mxu0 0
    %1624 = vmatprep.subr.bf16.mxu0 0
    %1625 = vmatpush1.bf16.msra.mxu0 0
    %1626 = vmatprep.subr.bf16.mxu0 0
    %1627 = vmatpush1.bf16.msra.mxu0 0
    %1628 = vmatprep.subr.bf16.mxu0 0
    %1629 = vmatpush1.bf16.msra.mxu0 0
    %1630 = vmatprep.subr.bf16.mxu0 0
    %1631 = vmatpush1.bf16.msra.mxu0 0
    %1632 = vmatprep.subr.bf16.mxu0 0
    %1633 = vmatpush1.bf16.msra.mxu0 0
    %1634 = vmatprep.subr.bf16.mxu0 0
    %1635 = vmatpush1.bf16.msra.mxu0 0
    %1636 = vmatprep.subr.bf16.mxu0 0
    %1637 = vmatpush1.bf16.msra.mxu0 0
    %1638 = vmatprep.subr.bf16.mxu0 0
    %1639 = vmatpush1.bf16.msra.mxu0 0
    %1640 = vmatprep.mubr.bf16.mxu0 0
    %1641 = vmatmul.mubr.bf16.gmra.mrb[0].mxu0 %v1529
    %v1642 = vpop.f32.mrb[0].mxu0
    %v1643 = vadd.f32 0.0, %v1642
    %v1644 = vpop.f32.mrb[0].mxu0
    %v1645 = vpop.f32.mrb[0].mxu0
    %v1646 = vpop.f32.mrb[0].mxu0
    %1647 = vdwg.mxu0
    %1648 = vmatprep.subr.bf16.mxu0 0
    %1649 = vmatpush1.bf16.msra.mxu0 %v255
    %1650 = vmatprep.subr.bf16.mxu0 0
    %1651 = vmatpush1.bf16.msra.mxu0 %v256
    %1652 = vmatprep.subr.bf16.mxu0 0
    %1653 = vmatpush1.bf16.msra.mxu0 %v257
    %1654 = vmatprep.subr.bf16.mxu0 0
    %1655 = vmatpush1.bf16.msra.mxu0 %v258
    %1656 = vmatprep.subr.bf16.mxu0 0
    %1657 = vmatpush1.bf16.msra.mxu0 %v259
    %1658 = vmatprep.subr.bf16.mxu0 0
    %1659 = vmatpush1.bf16.msra.mxu0 %v260
    %1660 = vmatprep.subr.bf16.mxu0 0
    %1661 = vmatpush1.bf16.msra.mxu0 %v261
    %1662 = vmatprep.subr.bf16.mxu0 0
    %1663 = vmatpush1.bf16.msra.mxu0 %v262
    %1664 = vmatprep.subr.bf16.mxu0 0
    %1665 = vmatpush1.bf16.msra.mxu0 0
    %1666 = vmatprep.subr.bf16.mxu0 0
    %1667 = vmatpush1.bf16.msra.mxu0 0
    %1668 = vmatprep.subr.bf16.mxu0 0
    %1669 = vmatpush1.bf16.msra.mxu0 0
    %1670 = vmatprep.subr.bf16.mxu0 0
    %1671 = vmatpush1.bf16.msra.mxu0 0
    %1672 = vmatprep.subr.bf16.mxu0 0
    %1673 = vmatpush1.bf16.msra.mxu0 0
    %1674 = vmatprep.subr.bf16.mxu0 0
    %1675 = vmatpush1.bf16.msra.mxu0 0
    %1676 = vmatprep.subr.bf16.mxu0 0
    %1677 = vmatpush1.bf16.msra.mxu0 0
    %1678 = vmatprep.subr.bf16.mxu0 0
    %1679 = vmatpush1.bf16.msra.mxu0 0
    %1680 = vmatprep.mubr.bf16.mxu0 0
    %1681 = vmatmul.mubr.bf16.gmra.mrb[0].mxu0 %v1607
    %v1682 = vpop.f32.mrb[0].mxu0
    %v1683 = vadd.f32 %v1643, %v1682
    %v1684 = vpop.f32.mrb[0].mxu0
    %v1685 = vpop.f32.mrb[0].mxu0
    %v1686 = vpop.f32.mrb[0].mxu0
    %1687 = vdwg.mxu0
    %v1688 = vxor.u32 %v1683, 2147483648
    %v1689 = vmul.f32 %v1688, 1.442695
    %v1690 = vpow.pop %v1689
    %v1691 = vadd.f32 %v1690, 1.0
    %v1692 = vrcp.pop %v1691
    %v1693 = vmul.f32 1.0, %v1692
    %v1694 = vtanh.pop %v1683
    %v1695 = vmul.f32 %v1693, %v1523
    %1697 = vrot.lane.b32.xlu0 %v1694, 64
    %v1698 = vpop.permute.xlu0 %1697
    %v1700 = vmul.f32 %v1693, %v1698
    %1702 = vrot.lane.b32.xlu0 %v1700, 32
    %v1703 = vpop.permute.xlu0 %1702
    %v1705 = vadd.f32 %v1695, %v1703
    %v1706 = vtanh.pop %v1705
    %1708 = vrot.lane.b32.xlu0 %v1706, 64
    %v1709 = vpop.permute.xlu0 %1708
    %v1711 = vmul.f32 %v1693, %v1709
    %p1712 = scmp.lt.s32.totalorder %s1573, 8
    %s1713 = scalar_select %p1712, 1, 0
    %v1714 = vstv %s1713
    %vm1715 = vcmp.eq.s32.totalorder %v1714, 1
    %v1716 = vsel %vm1715, %v1711, %v1522
    %v1717 = vsel %vm1715, %v1705, %v1523
    %v1718 = vpack.c.bf16 %v1716, %v1716
    %1720 = vrot.lane.b32.xlu0 %v1718, 32
    %v1721 = vpop.permute.xlu0 %1720
    %v1723 = vsel %vm179, %v1721, 0
    %1725 = vmatprep.subr.bf16.mxu0 0
    %1726 = vmatpush1.bf16.msra.mxu0 %v361
    %1727 = vmatprep.subr.bf16.mxu0 0
    %1728 = vmatpush1.bf16.msra.mxu0 %v362
    %1729 = vmatprep.subr.bf16.mxu0 0
    %1730 = vmatpush1.bf16.msra.mxu0 0
    %1731 = vmatprep.subr.bf16.mxu0 0
    %1732 = vmatpush1.bf16.msra.mxu0 0
    %1733 = vmatprep.subr.bf16.mxu0 0
    %1734 = vmatpush1.bf16.msra.mxu0 0
    %1735 = vmatprep.subr.bf16.mxu0 0
    %1736 = vmatpush1.bf16.msra.mxu0 0
    %1737 = vmatprep.subr.bf16.mxu0 0
    %1738 = vmatpush1.bf16.msra.mxu0 0
    %1739 = vmatprep.subr.bf16.mxu0 0
    %1740 = vmatpush1.bf16.msra.mxu0 0
    %1741 = vmatprep.subr.bf16.mxu0 0
    %1742 = vmatpush1.bf16.msra.mxu0 0
    %1743 = vmatprep.subr.bf16.mxu0 0
    %1744 = vmatpush1.bf16.msra.mxu0 0
    %1745 = vmatprep.subr.bf16.mxu0 0
    %1746 = vmatpush1.bf16.msra.mxu0 0
    %1747 = vmatprep.subr.bf16.mxu0 0
    %1748 = vmatpush1.bf16.msra.mxu0 0
    %1749 = vmatprep.subr.bf16.mxu0 0
    %1750 = vmatpush1.bf16.msra.mxu0 0
    %1751 = vmatprep.subr.bf16.mxu0 0
    %1752 = vmatpush1.bf16.msra.mxu0 0
    %1753 = vmatprep.subr.bf16.mxu0 0
    %1754 = vmatpush1.bf16.msra.mxu0 0
    %1755 = vmatprep.subr.bf16.mxu0 0
    %1756 = vmatpush1.bf16.msra.mxu0 0
    %1757 = vmatprep.mubr.bf16.mxu0 0
    %1758 = vmatmul.mubr.bf16.gmra.mrb[0].mxu0 %v1723
    %v1759 = vpop.f32.mrb[0].mxu0
    %v1760 = vadd.f32 %v120, %v1759
    %v1761 = vpop.f32.mrb[0].mxu0
    %v1762 = vpop.f32.mrb[0].mxu0
    %v1763 = vpop.f32.mrb[0].mxu0
    %1764 = vdwg.mxu0
    %s1765 = scalar_lea.vmem [#allocation12], 56
    %1766 = vst [vmem:[%s1765] sm:$0xff] %v1760
    %1768 = vrot.lane.b32.xlu0 %v1716, 32
    %v1769 = vpop.permute.xlu0 %1768
    %1771 = vst.msk [vmem:[#allocation13] sm:$0xff] %vm179, %v1769
    %1773 = vrot.lane.b32.xlu0 %v1717, 96
    %v1774 = vpop.permute.xlu0 %1773
    %1776 = vst.msk [vmem:[#allocation15] sm:$0xff] %vm179, %v1774
    // Predicated region
    $region46: #{tpu_custom_call.1} parent=1 // pred_check
      _
    $region47: #{tpu_custom_call.1} parent=1 // pred_check_branch
      %1778 = sbr.rel (0) target = $region49
    $region48: #{tpu_custom_call.1} parent=1 // pred_region
      %s1780 = ssub.s32 1024, 1024
      %1781 = vsyncadd [#allocation6], %s1780
      %s1782 = sshll.u32 [#allocation12], 4
      %s1783 = int_to_ptr.vmem [resolvable:$true] %s1782
      %1788 = dma.vmem_to_hbm [thread:$0]  %s1783, 1024, %s7, [#allocation6], 128, 128, 8
    $region49: #{tpu_custom_call.1} parent=1 // pred_fallthru
      _
    // Predicated region
    $region50: #{tpu_custom_call.1} parent=1 // pred_check
      _
    $region51: #{tpu_custom_call.1} parent=1 // pred_check_branch
      %1790 = sbr.rel (0) target = $region53
    $region52: #{tpu_custom_call.1} parent=1 // pred_region
      %s1792 = ssub.s32 128, 128
      %1793 = vsyncadd [#allocation14], %s1792
      %s1795 = sshll.u32 [#allocation13], 4
      %s1796 = int_to_ptr.vmem [resolvable:$true] %s1795
      %1798 = dma.vmem_to_hbm [thread:$0]  %s1796, 128, %s8, [#allocation14]
    $region53: #{tpu_custom_call.1} parent=1 // pred_fallthru
      _
    // Predicated region
    $region54: #{tpu_custom_call.1} parent=1 // pred_check
      _
    $region55: #{tpu_custom_call.1} parent=1 // pred_check_branch
      %1800 = sbr.rel (0) target = $region57
    $region56: #{tpu_custom_call.1} parent=1 // pred_region
      %s1802 = ssub.s32 128, 128
      %1803 = vsyncadd [#allocation14], %s1802
      %s1805 = sshll.u32 [#allocation15], 4
      %s1806 = int_to_ptr.vmem [resolvable:$true] %s1805
      %1808 = dma.vmem_to_hbm [thread:$0]  %s1806, 128, %s9, [#allocation14]
    $region57: #{tpu_custom_call.1} parent=1 // pred_fallthru
      _
    // Predicated region
    $region58: #{tpu_custom_call.1} parent=1 // pred_check
      _
    $region59: #{tpu_custom_call.1} parent=1 // pred_check_branch
      %1810 = sbr.rel (0) target = $region61
    $region60: #{tpu_custom_call.1} parent=1 // pred_region
      %1811 = dma.done [#allocation6], 1024
    $region61: #{tpu_custom_call.1} parent=1 // pred_fallthru
      _
    // Predicated region
    $region62: #{tpu_custom_call.1} parent=1 // pred_check
      _
    $region63: #{tpu_custom_call.1} parent=1 // pred_check_branch
      %1813 = sbr.rel (0) target = $region65
    $region64: #{tpu_custom_call.1} parent=1 // pred_region
      %1814 = dma.done [#allocation14], 128
    $region65: #{tpu_custom_call.1} parent=1 // pred_fallthru
      _
    // Predicated region
    $region66: #{tpu_custom_call.1} parent=1 // pred_check
      _
    $region67: #{tpu_custom_call.1} parent=1 // pred_check_branch
      %1816 = sbr.rel (0) target = $region69
    $region68: #{tpu_custom_call.1} parent=1 // pred_region
      %1817 = dma.done [#allocation14], 128
    $region69: #{tpu_custom_call.1} parent=1 // pred_fallthru
      _
    %1818 = vsyncpa [#allocation5], 1
    %1819 = vsyncpa [#allocation8], 1
    %1820 = vsyncpa [#allocation11], 1
    %1821 = vsyncpa [#allocation6], 1
    %1822 = vsyncpa [#allocation14], 1

</llo_original>
